<compile_context>
chip_gen: v5e
topology: v5e:2x2
jax: 0.10.0
libtpu: 0.0.40
codegen_flags: <defaults>
</compile_context>

<pallas_src>
import functools
import math

import jax
import jax.numpy as jnp
import numpy as np
from jax import lax
from jax.experimental import pallas as pl
from jax.experimental.pallas import tpu as pltpu

EPS = 1e-5  # nn.BatchNorm2d default eps


def _mask_b_taps(kernel_size):
    """Kernel taps visible under PixelCNN mask 'B' (center included)."""
    k = kernel_size
    lim = k * k // 2  # inclusive flat index of the center
    return tuple((t // k, t % k) for t in range(lim + 1))


def _residual_kernel(offsets, H, W, N,
                     x_ref, masks_ref, agg_ref,
                     w1_ref, b1_ref, g1_ref, be1_ref,
                     w2_ref, b2_ref, g2_ref, be2_ref,
                     out_ref):
    HIGH = lax.Precision.HIGHEST
    inv_count = 1.0 / float(N * H * W)

    x = x_ref[...]                 # (N*C, H*W), lane-dense
    agg = agg_ref[...]             # (N*C, N*C) same-channel aggregation matrix

    # Hoist the per-tap boundary masks once; both convs reuse them.
    # Center tap (offset (0,0)) needs no mask.
    tap_masks = [None if (di == 0 and dj == 0) else masks_ref[t:t + 1, :]
                 for t, (di, dj) in enumerate(offsets)]

    def masked_conv(v, w_ref, b_ref):
        # 'same' conv restricted to mask-'B' taps: shifted reads via lane rotate
        # (XLU) + boundary masks, then one MXU matmul for the taps*Cin -> Cout
        # contraction (weight is block-diagonal over the batch).
        slabs = []
        for (di, dj), m in zip(offsets, tap_masks):
            shift = -(di * W + dj)          # >= 0 for every mask-'B' tap
            assert shift >= 0
            s = v if shift == 0 else pltpu.roll(v, shift=shift, axis=1)
            if m is not None:
                s = s * m
            slabs.append(s)
        stacked = jnp.concatenate(slabs, axis=0)          # (T*N*C, H*W)
        return jnp.dot(w_ref[...], stacked,
                       preferred_element_type=jnp.float32,
                       precision=HIGH) + b_ref[...]

    def batchnorm_train(v, g_ref, be_ref):
        # nn.BatchNorm2d (training): per-channel stats over (N,H,W), biased
        # variance via E[x^2] - mu^2 (clamped at 0), eps=1e-5, affine.
        csum = jnp.dot(agg, v, preferred_element_type=jnp.float32, precision=HIGH)
        csq = jnp.dot(agg, v * v, preferred_element_type=jnp.float32, precision=HIGH)
        mean = jnp.sum(csum, axis=1, keepdims=True) * inv_count     # (N*C, 1)
        ex2 = jnp.sum(csq, axis=1, keepdims=True) * inv_count
        var = jnp.maximum(ex2 - mean * mean, 0.0)
        return (v - mean) * lax.rsqrt(var + EPS) * g_ref[...] + be_ref[...]

    # conv1 -> bn1 -> relu
    y = masked_conv(x, w1_ref, b1_ref)
    y = jnp.maximum(batchnorm_train(y, g1_ref, be1_ref), 0.0)

    # conv2 -> bn2 -> residual add -> relu  (full-width lane-dense stores)
    y2 = batchnorm_train(masked_conv(y, w2_ref, b2_ref), g2_ref, be2_ref)
    out_ref[...] = jnp.maximum(x + y2, 0.0)
    # TODO(synk): BatchNorm running-stat updates and the in-place weight-mask
    # mutation are training-time side effects with no forward-value impact.


@functools.partial(jax.jit, static_argnames=("kernel_size",))
def residual_layer_forward(x_nchw, params, kernel_size):
    k = kernel_size
    p = k // 2
    N, C, H, W = x_nchw.shape
    R, L = N * C, H * W

    # NCHW -> (N*C, H*W): a pure reshape (no transpose, no pad, no HBM round trip).
    x_flat = x_nchw.astype(jnp.float32).reshape(R, L)

    taps = _mask_b_taps(k)
    offsets = tuple((ki - p, kj - p) for (ki, kj) in taps)
    T = len(taps)

    # Static per-tap boundary masks over the flattened h*W + w lane axis.
    hh, ww = np.meshgrid(np.arange(H), np.arange(W), indexing="ij")
    m_np = np.zeros((T, L), np.float32)
    for t, (di, dj) in enumerate(offsets):
        ok = (hh + di >= 0) & (hh + di < H) & (ww + dj >= 0) & (ww + dj < W)
        m_np[t] = ok.reshape(-1).astype(np.float32)
    tap_masks = jnp.asarray(m_np)

    # Conv weight for the (N*C, T*N*C) @ (T*N*C, L) contraction:
    # per-tap (Cout, Cin) block, replicated block-diagonally over the batch.
    # (Only mask-'B' taps are included, which applies the PixelCNN mask.)
    eye_n = jnp.eye(N, dtype=jnp.float32)

    def big_weight(w_oihw):
        w = w_oihw.astype(jnp.float32)
        return jnp.concatenate(
            [jnp.kron(eye_n, w[:, :, ki, kj]) for (ki, kj) in taps], axis=1)

    # Same-channel (across batch) aggregation matrix for BatchNorm statistics.
    agg = jnp.kron(jnp.ones((N, N), jnp.float32), jnp.eye(C, dtype=jnp.float32))

    # Per-row (row = n*C + c) bias / gamma / beta vectors.
    rows = lambda v: jnp.tile(v.astype(jnp.float32), N).reshape(R, 1)

    kernel = functools.partial(_residual_kernel, offsets, H, W, N)
    vmem = pl.BlockSpec(memory_space=pltpu.MemorySpace.VMEM)
    # NOTE: grid-less (whole problem ~2 vregs). For scaled-up shapes, add a
    # grid over N (dimension_semantics=("parallel",)) with a p-row halo and
    # size per-step tiles against 64 MiB VMEM on v7x.
    out_flat = pl.pallas_call(
        kernel,
        out_shape=jax.ShapeDtypeStruct((R, L), jnp.float32),
        in_specs=[vmem] * 11,
        out_specs=vmem,
    )(x_flat, tap_masks, agg,
      big_weight(params["w1"]), rows(params["b1"]),
      rows(params["g1"]), rows(params["beta1"]),
      big_weight(params["w2"]), rows(params["b2"]),
      rows(params["g2"]), rows(params["beta2"]))

    return out_flat.reshape(N, C, H, W)   # back to NCHW (free reshape)


def _reference_forward(x_nchw, params, kernel_size):
    """Pure-JAX reference (XLA conv) for correctness checking."""
    k = kernel_size
    x = jnp.transpose(x_nchw, (0, 2, 3, 1)).astype(jnp.float32)
    mask = np.zeros((k, k), np.float32)
    for (ki, kj) in _mask_b_taps(k):
        mask[ki, kj] = 1.0
    mask = jnp.asarray(mask)

    def prep_w(w):
        return jnp.transpose(w, (2, 3, 1, 0)) * mask[:, :, None, None]

    def conv(v, w, b):
        o = lax.conv_general_dilated(v, w, (1, 1), "SAME",
                                     dimension_numbers=("NHWC", "HWIO", "NHWC"),
                                     precision=lax.Precision.HIGHEST)
        return o + b

    def bn(v, g, be):
        mu = v.mean(axis=(0, 1, 2), keepdims=True)
        var = ((v - mu) ** 2).mean(axis=(0, 1, 2), keepdims=True)
        return (v - mu) * lax.rsqrt(var + EPS) * g + be

    y = jnp.maximum(bn(conv(x, prep_w(params["w1"]), params["b1"]),
                       params["g1"], params["beta1"]), 0.0)
    y2 = bn(conv(y, prep_w(params["w2"]), params["b2"]),
            params["g2"], params["beta2"])
    out = jnp.maximum(x + y2, 0.0)
    return jnp.transpose(out, (0, 3, 1, 2))


if __name__ == "__main__":
    N, C, H, W = 2, 4, 16, 16
    k = 3

    key = jax.random.PRNGKey(0)
    kx, kw1, kb1, kw2, kb2 = jax.random.split(key, 5)
    bound = 1.0 / math.sqrt(C * k * k)   # nn.Conv2d default init scale
    params = {
        "w1": jax.random.uniform(kw1, (C, C, k, k), jnp.float32, -bound, bound),
        "b1": jax.random.uniform(kb1, (C,), jnp.float32, -bound, bound),
        "g1": jnp.ones((C,), jnp.float32),      # BatchNorm weight init
        "beta1": jnp.zeros((C,), jnp.float32),  # BatchNorm bias init
        "w2": jax.random.uniform(kw2, (C, C, k, k), jnp.float32, -bound, bound),
        "b2": jax.random.uniform(kb2, (C,), jnp.float32, -bound, bound),
        "g2": jnp.ones((C,), jnp.float32),
        "beta2": jnp.zeros((C,), jnp.float32),
    }
    x = jax.random.normal(kx, (N, C, H, W), jnp.float32)   # PyTorch-style NCHW input

    out = jax.block_until_ready(residual_layer_forward(x, params, kernel_size=k))
    ref = jax.block_until_ready(_reference_forward(x, params, k))
    assert out.shape == (N, C, H, W)
    np.testing.assert_allclose(np.asarray(out), np.asarray(ref), rtol=1e-3, atol=1e-3)
    print("KERNEL_OK")
</pallas_src>

<mosaic_0001>
module attributes {stable_mosaic.version = 11 : i64} {
  func.func @_residual_kernel(%arg0: memref<8x256xf32, #tpu.memory_space<vmem>>, %arg1: memref<5x256xf32, #tpu.memory_space<vmem>>, %arg2: memref<8x8xf32, #tpu.memory_space<vmem>>, %arg3: memref<8x40xf32, #tpu.memory_space<vmem>>, %arg4: memref<8x1xf32, #tpu.memory_space<vmem>>, %arg5: memref<8x1xf32, #tpu.memory_space<vmem>>, %arg6: memref<8x1xf32, #tpu.memory_space<vmem>>, %arg7: memref<8x40xf32, #tpu.memory_space<vmem>>, %arg8: memref<8x1xf32, #tpu.memory_space<vmem>>, %arg9: memref<8x1xf32, #tpu.memory_space<vmem>>, %arg10: memref<8x1xf32, #tpu.memory_space<vmem>>, %arg11: memref<8x256xf32, #tpu.memory_space<vmem>>) attributes {dimension_semantics = [], scalar_prefetch = 0 : i64, scratch_operands = 0 : i64, tpu.core_type = #tpu.core_type<tc>} {
    %c0 = arith.constant 0 : index
    %c0_0 = arith.constant 0 : index
    %0 = vector.load %arg0[%c0, %c0_0] : memref<8x256xf32, #tpu.memory_space<vmem>>, vector<8x256xf32>
    %c0_1 = arith.constant 0 : index
    %c0_2 = arith.constant 0 : index
    %1 = vector.load %arg2[%c0_1, %c0_2] : memref<8x8xf32, #tpu.memory_space<vmem>>, vector<8x8xf32>
    %c0_3 = arith.constant 0 : index
    %c0_4 = arith.constant 0 : index
    %2 = vector.load %arg1[%c0_3, %c0_4] : memref<5x256xf32, #tpu.memory_space<vmem>>, vector<1x256xf32>
    %c1 = arith.constant 1 : index
    %c0_5 = arith.constant 0 : index
    %3 = vector.load %arg1[%c1, %c0_5] : memref<5x256xf32, #tpu.memory_space<vmem>>, vector<1x256xf32>
    %c2 = arith.constant 2 : index
    %c0_6 = arith.constant 0 : index
    %4 = vector.load %arg1[%c2, %c0_6] : memref<5x256xf32, #tpu.memory_space<vmem>>, vector<1x256xf32>
    %c3 = arith.constant 3 : index
    %c0_7 = arith.constant 0 : index
    %5 = vector.load %arg1[%c3, %c0_7] : memref<5x256xf32, #tpu.memory_space<vmem>>, vector<1x256xf32>
    %c17_i32 = arith.constant 17 : i32
    %6 = tpu.dynamic_rotate %0 by %c17_i32 dim 1 : vector<8x256xf32>, i32 -> vector<8x256xf32>
    %7 = vector.broadcast %2 : vector<1x256xf32> to vector<8x256xf32>
    %8 = arith.mulf %6, %7 : vector<8x256xf32>
    %c16_i32 = arith.constant 16 : i32
    %9 = tpu.dynamic_rotate %0 by %c16_i32 dim 1 : vector<8x256xf32>, i32 -> vector<8x256xf32>
    %10 = vector.broadcast %3 : vector<1x256xf32> to vector<8x256xf32>
    %11 = arith.mulf %9, %10 : vector<8x256xf32>
    %c15_i32 = arith.constant 15 : i32
    %12 = tpu.dynamic_rotate %0 by %c15_i32 dim 1 : vector<8x256xf32>, i32 -> vector<8x256xf32>
    %13 = vector.broadcast %4 : vector<1x256xf32> to vector<8x256xf32>
    %14 = arith.mulf %12, %13 : vector<8x256xf32>
    %c1_i32 = arith.constant 1 : i32
    %15 = tpu.dynamic_rotate %0 by %c1_i32 dim 1 : vector<8x256xf32>, i32 -> vector<8x256xf32>
    %16 = vector.broadcast %5 : vector<1x256xf32> to vector<8x256xf32>
    %17 = arith.mulf %15, %16 : vector<8x256xf32>
    %18 = tpu.concatenate %8, %11, %14, %17, %0 in 0 : vector<8x256xf32>, vector<8x256xf32>, vector<8x256xf32>, vector<8x256xf32>, vector<8x256xf32> -> vector<40x256xf32>
    %c0_8 = arith.constant 0 : index
    %c0_9 = arith.constant 0 : index
    %19 = vector.load %arg3[%c0_8, %c0_9] : memref<8x40xf32, #tpu.memory_space<vmem>>, vector<8x40xf32>
    %cst = arith.constant dense<0.000000e+00> : vector<8x256xf32>
    %20 = tpu.matmul %19, %18, %cst {dimension_numbers = #tpu.dot_dimension_numbers<[1], [0], [0], [1], [0, 0, 1, 1], [], []>, precision = #tpu.contract_precision<fp32>} : vector<8x40xf32>, vector<40x256xf32>, vector<8x256xf32> -> vector<8x256xf32>
    %c0_10 = arith.constant 0 : index
    %c0_11 = arith.constant 0 : index
    %21 = vector.load %arg4[%c0_10, %c0_11] : memref<8x1xf32, #tpu.memory_space<vmem>>, vector<8x1xf32>
    %22 = vector.broadcast %21 : vector<8x1xf32> to vector<8x256xf32>
    %23 = arith.addf %20, %22 : vector<8x256xf32>
    %cst_12 = arith.constant dense<0.000000e+00> : vector<8x256xf32>
    %24 = tpu.matmul %1, %23, %cst_12 {dimension_numbers = #tpu.dot_dimension_numbers<[1], [0], [0], [1], [0, 0, 1, 1], [], []>, precision = #tpu.contract_precision<fp32>} : vector<8x8xf32>, vector<8x256xf32>, vector<8x256xf32> -> vector<8x256xf32>
    %25 = arith.mulf %23, %23 : vector<8x256xf32>
    %cst_13 = arith.constant dense<0.000000e+00> : vector<8x256xf32>
    %26 = tpu.matmul %1, %25, %cst_13 {dimension_numbers = #tpu.dot_dimension_numbers<[1], [0], [0], [1], [0, 0, 1, 1], [], []>, precision = #tpu.contract_precision<fp32>} : vector<8x8xf32>, vector<8x256xf32>, vector<8x256xf32> -> vector<8x256xf32>
    %cst_14 = arith.constant dense<0.000000e+00> : vector<8xf32>
    %27 = vector.multi_reduction <add>, %24, %cst_14 [1] : vector<8x256xf32> to vector<8xf32>
    %28 = vector.shape_cast %27 : vector<8xf32> to vector<8x1xf32>
    %cst_15 = arith.constant 0.001953125 : f32
    %29 = vector.broadcast %cst_15 : f32 to vector<8x1xf32>
    %30 = arith.mulf %28, %29 : vector<8x1xf32>
    %cst_16 = arith.constant dense<0.000000e+00> : vector<8xf32>
    %31 = vector.multi_reduction <add>, %26, %cst_16 [1] : vector<8x256xf32> to vector<8xf32>
    %32 = vector.shape_cast %31 : vector<8xf32> to vector<8x1xf32>
    %cst_17 = arith.constant 0.001953125 : f32
    %33 = vector.broadcast %cst_17 : f32 to vector<8x1xf32>
    %34 = arith.mulf %32, %33 : vector<8x1xf32>
    %35 = arith.mulf %30, %30 : vector<8x1xf32>
    %36 = arith.subf %34, %35 : vector<8x1xf32>
    %cst_18 = arith.constant 0.000000e+00 : f32
    %37 = vector.broadcast %cst_18 : f32 to vector<8x1xf32>
    %38 = arith.maximumf %36, %37 : vector<8x1xf32>
    %39 = vector.broadcast %30 : vector<8x1xf32> to vector<8x256xf32>
    %40 = arith.subf %23, %39 : vector<8x256xf32>
    %cst_19 = arith.constant 9.99999974E-6 : f32
    %41 = vector.broadcast %cst_19 : f32 to vector<8x1xf32>
    %42 = arith.addf %38, %41 : vector<8x1xf32>
    %43 = math.rsqrt %42 : vector<8x1xf32>
    %44 = vector.broadcast %43 : vector<8x1xf32> to vector<8x256xf32>
    %45 = arith.mulf %40, %44 : vector<8x256xf32>
    %c0_20 = arith.constant 0 : index
    %c0_21 = arith.constant 0 : index
    %46 = vector.load %arg5[%c0_20, %c0_21] : memref<8x1xf32, #tpu.memory_space<vmem>>, vector<8x1xf32>
    %47 = vector.broadcast %46 : vector<8x1xf32> to vector<8x256xf32>
    %48 = arith.mulf %45, %47 : vector<8x256xf32>
    %c0_22 = arith.constant 0 : index
    %c0_23 = arith.constant 0 : index
    %49 = vector.load %arg6[%c0_22, %c0_23] : memref<8x1xf32, #tpu.memory_space<vmem>>, vector<8x1xf32>
    %50 = vector.broadcast %49 : vector<8x1xf32> to vector<8x256xf32>
    %51 = arith.addf %48, %50 : vector<8x256xf32>
    %cst_24 = arith.constant 0.000000e+00 : f32
    %52 = vector.broadcast %cst_24 : f32 to vector<8x256xf32>
    %53 = arith.maximumf %51, %52 : vector<8x256xf32>
    %c17_i32_25 = arith.constant 17 : i32
    %54 = tpu.dynamic_rotate %53 by %c17_i32_25 dim 1 : vector<8x256xf32>, i32 -> vector<8x256xf32>
    %55 = vector.broadcast %2 : vector<1x256xf32> to vector<8x256xf32>
    %56 = arith.mulf %54, %55 : vector<8x256xf32>
    %c16_i32_26 = arith.constant 16 : i32
    %57 = tpu.dynamic_rotate %53 by %c16_i32_26 dim 1 : vector<8x256xf32>, i32 -> vector<8x256xf32>
    %58 = vector.broadcast %3 : vector<1x256xf32> to vector<8x256xf32>
    %59 = arith.mulf %57, %58 : vector<8x256xf32>
    %c15_i32_27 = arith.constant 15 : i32
    %60 = tpu.dynamic_rotate %53 by %c15_i32_27 dim 1 : vector<8x256xf32>, i32 -> vector<8x256xf32>
    %61 = vector.broadcast %4 : vector<1x256xf32> to vector<8x256xf32>
    %62 = arith.mulf %60, %61 : vector<8x256xf32>
    %c1_i32_28 = arith.constant 1 : i32
    %63 = tpu.dynamic_rotate %53 by %c1_i32_28 dim 1 : vector<8x256xf32>, i32 -> vector<8x256xf32>
    %64 = vector.broadcast %5 : vector<1x256xf32> to vector<8x256xf32>
    %65 = arith.mulf %63, %64 : vector<8x256xf32>
    %66 = tpu.concatenate %56, %59, %62, %65, %53 in 0 : vector<8x256xf32>, vector<8x256xf32>, vector<8x256xf32>, vector<8x256xf32>, vector<8x256xf32> -> vector<40x256xf32>
    %c0_29 = arith.constant 0 : index
    %c0_30 = arith.constant 0 : index
    %67 = vector.load %arg7[%c0_29, %c0_30] : memref<8x40xf32, #tpu.memory_space<vmem>>, vector<8x40xf32>
    %cst_31 = arith.constant dense<0.000000e+00> : vector<8x256xf32>
    %68 = tpu.matmul %67, %66, %cst_31 {dimension_numbers = #tpu.dot_dimension_numbers<[1], [0], [0], [1], [0, 0, 1, 1], [], []>, precision = #tpu.contract_precision<fp32>} : vector<8x40xf32>, vector<40x256xf32>, vector<8x256xf32> -> vector<8x256xf32>
    %c0_32 = arith.constant 0 : index
    %c0_33 = arith.constant 0 : index
    %69 = vector.load %arg8[%c0_32, %c0_33] : memref<8x1xf32, #tpu.memory_space<vmem>>, vector<8x1xf32>
    %70 = vector.broadcast %69 : vector<8x1xf32> to vector<8x256xf32>
    %71 = arith.addf %68, %70 : vector<8x256xf32>
    %cst_34 = arith.constant dense<0.000000e+00> : vector<8x256xf32>
    %72 = tpu.matmul %1, %71, %cst_34 {dimension_numbers = #tpu.dot_dimension_numbers<[1], [0], [0], [1], [0, 0, 1, 1], [], []>, precision = #tpu.contract_precision<fp32>} : vector<8x8xf32>, vector<8x256xf32>, vector<8x256xf32> -> vector<8x256xf32>
    %73 = arith.mulf %71, %71 : vector<8x256xf32>
    %cst_35 = arith.constant dense<0.000000e+00> : vector<8x256xf32>
    %74 = tpu.matmul %1, %73, %cst_35 {dimension_numbers = #tpu.dot_dimension_numbers<[1], [0], [0], [1], [0, 0, 1, 1], [], []>, precision = #tpu.contract_precision<fp32>} : vector<8x8xf32>, vector<8x256xf32>, vector<8x256xf32> -> vector<8x256xf32>
    %cst_36 = arith.constant dense<0.000000e+00> : vector<8xf32>
    %75 = vector.multi_reduction <add>, %72, %cst_36 [1] : vector<8x256xf32> to vector<8xf32>
    %76 = vector.shape_cast %75 : vector<8xf32> to vector<8x1xf32>
    %cst_37 = arith.constant 0.001953125 : f32
    %77 = vector.broadcast %cst_37 : f32 to vector<8x1xf32>
    %78 = arith.mulf %76, %77 : vector<8x1xf32>
    %cst_38 = arith.constant dense<0.000000e+00> : vector<8xf32>
    %79 = vector.multi_reduction <add>, %74, %cst_38 [1] : vector<8x256xf32> to vector<8xf32>
    %80 = vector.shape_cast %79 : vector<8xf32> to vector<8x1xf32>
    %cst_39 = arith.constant 0.001953125 : f32
    %81 = vector.broadcast %cst_39 : f32 to vector<8x1xf32>
    %82 = arith.mulf %80, %81 : vector<8x1xf32>
    %83 = arith.mulf %78, %78 : vector<8x1xf32>
    %84 = arith.subf %82, %83 : vector<8x1xf32>
    %cst_40 = arith.constant 0.000000e+00 : f32
    %85 = vector.broadcast %cst_40 : f32 to vector<8x1xf32>
    %86 = arith.maximumf %84, %85 : vector<8x1xf32>
    %87 = vector.broadcast %78 : vector<8x1xf32> to vector<8x256xf32>
    %88 = arith.subf %71, %87 : vector<8x256xf32>
    %cst_41 = arith.constant 9.99999974E-6 : f32
    %89 = vector.broadcast %cst_41 : f32 to vector<8x1xf32>
    %90 = arith.addf %86, %89 : vector<8x1xf32>
    %91 = math.rsqrt %90 : vector<8x1xf32>
    %92 = vector.broadcast %91 : vector<8x1xf32> to vector<8x256xf32>
    %93 = arith.mulf %88, %92 : vector<8x256xf32>
    %c0_42 = arith.constant 0 : index
    %c0_43 = arith.constant 0 : index
    %94 = vector.load %arg9[%c0_42, %c0_43] : memref<8x1xf32, #tpu.memory_space<vmem>>, vector<8x1xf32>
    %95 = vector.broadcast %94 : vector<8x1xf32> to vector<8x256xf32>
    %96 = arith.mulf %93, %95 : vector<8x256xf32>
    %c0_44 = arith.constant 0 : index
    %c0_45 = arith.constant 0 : index
    %97 = vector.load %arg10[%c0_44, %c0_45] : memref<8x1xf32, #tpu.memory_space<vmem>>, vector<8x1xf32>
    %98 = vector.broadcast %97 : vector<8x1xf32> to vector<8x256xf32>
    %99 = arith.addf %96, %98 : vector<8x256xf32>
    %100 = arith.addf %0, %99 : vector<8x256xf32>
    %cst_46 = arith.constant 0.000000e+00 : f32
    %101 = vector.broadcast %cst_46 : f32 to vector<8x256xf32>
    %102 = arith.maximumf %100, %101 : vector<8x256xf32>
    %c0_47 = arith.constant 0 : index
    %c0_48 = arith.constant 0 : index
    %103 = vector.load %arg11[%c0_47, %c0_48] : memref<8x256xf32, #tpu.memory_space<vmem>>, vector<8x256xf32>
    tpu.vector_store %arg11[%c0_47, %c0_48], %102 {strides = array<i32>} : memref<8x256xf32, #tpu.memory_space<vmem>>, vector<8x256xf32>,
    return
  }
}

</mosaic_0001>

<llo_original>
// kernel: tile.33
$region0: #{tile.33}
  #allocation0 [shape = 's32[1]{0}', space=sflag, size = 0x4, scoped, tag = 'scoped memory for tile.33']
  %s0 = inlined_call_operand.vmem [shape: f32[4], index: 0, kind: input, shape index: {}]
  %s1 = inlined_call_operand.vmem [shape: f32[2,4], index: 1, kind: output, shape index: {}]
  // Predicated region
  $region2: #{tile.33} parent=0 // pred_check
    _
  $region3: #{tile.33} parent=0 // pred_check_branch
    %3 = sbr.rel (0) target = $region5
  $region4: #{tile.33} parent=0 // pred_region
    _
  $region5: #{tile.33} parent=0 // pred_fallthru
    _
  %v4 = vld [vmem:[%s0] ss:$0 sm:$0xff]
  %5 = vst [vmem:[%s1] sm:$0x3] %v4

// kernel: tile.0
$region0: #{tile.0}
  %s0 = inlined_call_operand.vmem [shape: f32[2,4], index: 0, kind: input, shape index: {}]
  %s1 = inlined_call_operand.vmem [shape: f32[8,1], index: 1, kind: output, shape index: {}]
  $region1: #{tile.0} parent=0
    #allocation0 [shape = 'u8[4096]{0}', space=vmem, size = 0x1000, scoped, tag = 'scoped mem for input reshape']
    %s3 = ssub.s32 4, 1
    %v4 = vld [vmem:[%s0] sm:%s3]
    %5 = vst [vmem:[#allocation0] sm:%s3] %v4
    %v6 = vld [vmem:[#allocation0] sm:$0x3]
    %vm7 = vcmask 7168
    %8 = vst.msk [vmem:[%s1] ss:$4 sm:$0x3] %vm7, %v6
    %v9 = vld [vmem:[#allocation0] sm:$0x3]
    %10 = vrot.lane.b32.xlu0 %v9, 127
    %v11 = vpop.permute.xlu0 %10
    %vm12 = vcmask 7168
    %s13 = scalar_lea.vmem %s1, 1
    %14 = vst.msk [vmem:[%s13] ss:$4 sm:$0x3] %vm12, %v11
    %v15 = vld [vmem:[#allocation0] sm:$0x3]
    %16 = vrot.lane.b32.xlu0 %v15, 126
    %v17 = vpop.permute.xlu0 %16
    %vm18 = vcmask 7168
    %s19 = scalar_lea.vmem %s1, 2
    %20 = vst.msk [vmem:[%s19] ss:$4 sm:$0x3] %vm18, %v17
    %v21 = vld [vmem:[#allocation0] sm:$0x3]
    %22 = vrot.lane.b32.xlu0 %v21, 125
    %v23 = vpop.permute.xlu0 %22
    %vm24 = vcmask 7168
    %s25 = scalar_lea.vmem %s1, 3
    %26 = vst.msk [vmem:[%s25] ss:$4 sm:$0x3] %vm24, %v23

// kernel: residual_layer_forward.1
$region0: #{residual_layer_forward.1}
  #allocation0 [shape = 'u32[]', space=smem, size = 0x4, offset = 0x4, fixed_abs, tag = 'smem constant byte address 0x4 - core index']
  #allocation1 [shape = 'u32[72,128]{1,0:T(1,128)}', space=vmem, size = 0x9000, scoped, tag = 'internal scratch']
  %s0 = inlined_call_operand.vmem [shape: f32[8,256], index: 0, kind: input, shape index: {}]
  %s1 = inlined_call_operand.vmem [shape: f32[5,256], index: 1, kind: input, shape index: {}]
  %s2 = inlined_call_operand.vmem [shape: f32[8,8], index: 2, kind: input, shape index: {}]
  %s3 = inlined_call_operand.vmem [shape: f32[8,40], index: 3, kind: input, shape index: {}]
  %s4 = inlined_call_operand.vmem [shape: f32[8,1], index: 4, kind: input, shape index: {}]
  %s5 = inlined_call_operand.vmem [shape: f32[8,1], index: 5, kind: input, shape index: {}]
  %s6 = inlined_call_operand.vmem [shape: f32[8,1], index: 6, kind: input, shape index: {}]
  %s7 = inlined_call_operand.vmem [shape: f32[8,40], index: 7, kind: input, shape index: {}]
  %s8 = inlined_call_operand.vmem [shape: f32[8,1], index: 8, kind: input, shape index: {}]
  %s9 = inlined_call_operand.vmem [shape: f32[8,1], index: 9, kind: input, shape index: {}]
  %s10 = inlined_call_operand.vmem [shape: f32[8,1], index: 10, kind: input, shape index: {}]
  %s11 = inlined_call_operand.vmem [shape: f32[8,256], index: 11, kind: output, shape index: {}]
  %s12 = sld [smem:[#allocation0]]
  $region54: #{residual_layer_forward.1} parent=0
    _
  %s14 = ssub.s32 1, %s12
  %s15 = scalar_select 0, %s14, %s12
  // Predicated region
  $region2: #{residual_layer_forward.1} parent=0 // pred_check
    _
  $region3: #{residual_layer_forward.1} parent=0 // pred_check_branch
    %17 = sbr.rel (0) target = $region5
  $region4: #{residual_layer_forward.1} parent=0 // pred_region
    _
  $region5: #{residual_layer_forward.1} parent=0 // pred_fallthru
    _
  // Predicated region
  $region6: #{residual_layer_forward.1} parent=0 // pred_check
    _
  $region7: #{residual_layer_forward.1} parent=0 // pred_check_branch
    %19 = sbr.rel (0) target = $region9
  $region8: #{residual_layer_forward.1} parent=0 // pred_region
    _
  $region9: #{residual_layer_forward.1} parent=0 // pred_fallthru
    _
  // Predicated region
  $region10: #{residual_layer_forward.1} parent=0 // pred_check
    _
  $region11: #{residual_layer_forward.1} parent=0 // pred_check_branch
    %21 = sbr.rel (0) target = $region13
  $region12: #{residual_layer_forward.1} parent=0 // pred_region
    _
  $region13: #{residual_layer_forward.1} parent=0 // pred_fallthru
    _
  // Predicated region
  $region14: #{residual_layer_forward.1} parent=0 // pred_check
    _
  $region15: #{residual_layer_forward.1} parent=0 // pred_check_branch
    %23 = sbr.rel (0) target = $region17
  $region16: #{residual_layer_forward.1} parent=0 // pred_region
    _
  $region17: #{residual_layer_forward.1} parent=0 // pred_fallthru
    _
  // Predicated region
  $region18: #{residual_layer_forward.1} parent=0 // pred_check
    _
  $region19: #{residual_layer_forward.1} parent=0 // pred_check_branch
    %25 = sbr.rel (0) target = $region21
  $region20: #{residual_layer_forward.1} parent=0 // pred_region
    _
  $region21: #{residual_layer_forward.1} parent=0 // pred_fallthru
    _
  // Predicated region
  $region22: #{residual_layer_forward.1} parent=0 // pred_check
    _
  $region23: #{residual_layer_forward.1} parent=0 // pred_check_branch
    %27 = sbr.rel (0) target = $region25
  $region24: #{residual_layer_forward.1} parent=0 // pred_region
    _
  $region25: #{residual_layer_forward.1} parent=0 // pred_fallthru
    _
  // Predicated region
  $region26: #{residual_layer_forward.1} parent=0 // pred_check
    _
  $region27: #{residual_layer_forward.1} parent=0 // pred_check_branch
    %29 = sbr.rel (0) target = $region29
  $region28: #{residual_layer_forward.1} parent=0 // pred_region
    _
  $region29: #{residual_layer_forward.1} parent=0 // pred_fallthru
    _
  // Predicated region
  $region30: #{residual_layer_forward.1} parent=0 // pred_check
    _
  $region31: #{residual_layer_forward.1} parent=0 // pred_check_branch
    %31 = sbr.rel (0) target = $region33
  $region32: #{residual_layer_forward.1} parent=0 // pred_region
    _
  $region33: #{residual_layer_forward.1} parent=0 // pred_fallthru
    _
  // Predicated region
  $region34: #{residual_layer_forward.1} parent=0 // pred_check
    _
  $region35: #{residual_layer_forward.1} parent=0 // pred_check_branch
    %33 = sbr.rel (0) target = $region37
  $region36: #{residual_layer_forward.1} parent=0 // pred_region
    _
  $region37: #{residual_layer_forward.1} parent=0 // pred_fallthru
    _
  // Predicated region
  $region38: #{residual_layer_forward.1} parent=0 // pred_check
    _
  $region39: #{residual_layer_forward.1} parent=0 // pred_check_branch
    %35 = sbr.rel (0) target = $region41
  $region40: #{residual_layer_forward.1} parent=0 // pred_region
    _
  $region41: #{residual_layer_forward.1} parent=0 // pred_fallthru
    _
  // Predicated region
  $region42: #{residual_layer_forward.1} parent=0 // pred_check
    _
  $region43: #{residual_layer_forward.1} parent=0 // pred_check_branch
    %37 = sbr.rel (0) target = $region45
  $region44: #{residual_layer_forward.1} parent=0 // pred_region
    _
  $region45: #{residual_layer_forward.1} parent=0 // pred_fallthru
    _
  %v38 = vld [vmem:[%s0] sm:$0xff]
  %v39 = vld [vmem:[%s0 + $0x8] sm:$0xff]
  %v40 = vld [vmem:[%s2] sm:$0xff]
  %v41 = vld [vmem:[%s1] ss:$8 sm:$0x3]
  %s42 = scalar_lea.vmem %s1, 1
  %v43 = vld [vmem:[%s42] ss:$8 sm:$0x3]
  %s44 = scalar_lea.vmem %s1, 2
  %v45 = vld [vmem:[%s44] ss:$8 sm:$0x3]
  %s46 = scalar_lea.vmem %s1, 3
  %v47 = vld [vmem:[%s46] ss:$8 sm:$0x3]
  %48 = vrot.lane.b32.xlu0 %v38, 17
  %v49 = vpop.permute.xlu0 %48
  %50 = vrot.lane.b32.xlu0 %v39, 17
  %v51 = vpop.permute.xlu0 %50
  %v52 = vlaneseq
  %v53 = vand.u32 %v52, 127
  %vm54 = vcmp.lt.s32.totalorder %v53, 17
  %v55 = vsel %vm54, %v49, %v51
  %v56 = vsel %vm54, %v51, %v49
  %v58 = vperm.slane %v41, 0
  %v59 = vperm.slane %v41, 1
  %v62 = vmul.f32 %v56, %v58
  %v63 = vmul.f32 %v55, %v59
  %64 = vrot.lane.b32.xlu0 %v38, 16
  %v65 = vpop.permute.xlu0 %64
  %66 = vrot.lane.b32.xlu0 %v39, 16
  %v67 = vpop.permute.xlu0 %66
  %vm68 = vcmp.lt.s32.totalorder %v53, 16
  %v69 = vsel %vm68, %v65, %v67
  %v70 = vsel %vm68, %v67, %v65
  %v72 = vperm.slane %v43, 0
  %v73 = vperm.slane %v43, 1
  %v76 = vmul.f32 %v70, %v72
  %v77 = vmul.f32 %v69, %v73
  %78 = vrot.lane.b32.xlu0 %v38, 15
  %v79 = vpop.permute.xlu0 %78
  %80 = vrot.lane.b32.xlu0 %v39, 15
  %v81 = vpop.permute.xlu0 %80
  %vm82 = vcmp.lt.s32.totalorder %v53, 15
  %v83 = vsel %vm82, %v79, %v81
  %v84 = vsel %vm82, %v81, %v79
  %v86 = vperm.slane %v45, 0
  %v87 = vperm.slane %v45, 1
  %v90 = vmul.f32 %v84, %v86
  %v91 = vmul.f32 %v83, %v87
  %92 = vrot.lane.b32.xlu0 %v38, 1
  %v93 = vpop.permute.xlu0 %92
  %94 = vrot.lane.b32.xlu0 %v39, 1
  %v95 = vpop.permute.xlu0 %94
  %vm96 = vcmp.lt.s32.totalorder %v53, 1
  %v97 = vsel %vm96, %v93, %v95
  %v98 = vsel %vm96, %v95, %v93
  %v100 = vperm.slane %v47, 0
  %v101 = vperm.slane %v47, 1
  %v104 = vmul.f32 %v98, %v100
  %v105 = vmul.f32 %v97, %v101
  %v106 = vld [vmem:[%s3] sm:$0xff]
  %v107 = vld [vmem:[%s4] sm:$0xff]
  %109 = vset.pattern.permute.xlu0 0
  %110 = vperm.xlu0 %109, %v107
  %v111 = vpop.permute.xlu0 %110
  %vm113 = vcmask 326656
  %v115 = vsel %vm113, %v106, 0
  %117 = vmatpush.msra.mxu0 0.0
  %118 = vmatpush.msra.mxu0 0.0
  %119 = vmatpush.msra.mxu0 0.0
  %120 = vmatpush.msra.mxu0 0.0
  %121 = vmatpush.msra.mxu0 0.0
  %122 = vmatpush.msra.mxu0 0.0
  %123 = vmatpush.msra.mxu0 0.0
  %124 = vmatpush.msra.mxu0 0.0
  %125 = vmatpush.msra.mxu0 0.0
  %126 = vmatpush.msra.mxu0 0.0
  %127 = vmatpush.msra.mxu0 0.0
  %v128 = vand.u32 %v38, 4294901760
  %129 = vmatpush.msra.mxu0 %v128
  %v130 = vand.u32 %v104, 4294901760
  %131 = vmatpush.msra.mxu0 %v130
  %v132 = vand.u32 %v90, 4294901760
  %133 = vmatpush.msra.mxu0 %v132
  %v134 = vand.u32 %v76, 4294901760
  %135 = vmatpush.msra.mxu0 %v134
  %v136 = vand.u32 %v62, 4294901760
  %137 = vmatpush.msra.mxu0 %v136
  %v138 = vand.u32 %v115, 4294901760
  %v139 = vsub.f32 %v115, %v138
  %v140 = vand.u32 %v139, 4294901760
  %v141 = vsub.f32 %v139, %v140
  %v142 = vand.u32 %v141, 4294901760
  %143 = vmatmul.f32.gmra.mxu0 %v142
  %v144 = vpop.f32.mrf.mxu0
  %v145 = vadd.f32 %v111, %v144
  %146 = vdwg.mxu0
  %147 = vmatpush.msra.mxu0 0.0
  %148 = vmatpush.msra.mxu0 0.0
  %149 = vmatpush.msra.mxu0 0.0
  %150 = vmatpush.msra.mxu0 0.0
  %151 = vmatpush.msra.mxu0 0.0
  %152 = vmatpush.msra.mxu0 0.0
  %153 = vmatpush.msra.mxu0 0.0
  %154 = vmatpush.msra.mxu0 0.0
  %155 = vmatpush.msra.mxu0 0.0
  %156 = vmatpush.msra.mxu0 0.0
  %157 = vmatpush.msra.mxu0 0.0
  %v158 = vand.u32 %v38, 4294901760
  %v159 = vsub.f32 %v38, %v158
  %v160 = vand.u32 %v159, 4294901760
  %v161 = vsub.f32 %v159, %v160
  %v162 = vand.u32 %v161, 4294901760
  %163 = vmatpush.msra.mxu0 %v162
  %v164 = vand.u32 %v104, 4294901760
  %v165 = vsub.f32 %v104, %v164
  %v166 = vand.u32 %v165, 4294901760
  %v167 = vsub.f32 %v165, %v166
  %v168 = vand.u32 %v167, 4294901760
  %169 = vmatpush.msra.mxu0 %v168
  %v170 = vand.u32 %v90, 4294901760
  %v171 = vsub.f32 %v90, %v170
  %v172 = vand.u32 %v171, 4294901760
  %v173 = vsub.f32 %v171, %v172
  %v174 = vand.u32 %v173, 4294901760
  %175 = vmatpush.msra.mxu0 %v174
  %v176 = vand.u32 %v76, 4294901760
  %v177 = vsub.f32 %v76, %v176
  %v178 = vand.u32 %v177, 4294901760
  %v179 = vsub.f32 %v177, %v178
  %v180 = vand.u32 %v179, 4294901760
  %181 = vmatpush.msra.mxu0 %v180
  %v182 = vand.u32 %v62, 4294901760
  %v183 = vsub.f32 %v62, %v182
  %v184 = vand.u32 %v183, 4294901760
  %v185 = vsub.f32 %v183, %v184
  %v186 = vand.u32 %v185, 4294901760
  %187 = vmatpush.msra.mxu0 %v186
  %v188 = vand.u32 %v115, 4294901760
  %189 = vmatmul.f32.gmra.mxu0 %v188
  %v190 = vpop.f32.mrf.mxu0
  %v191 = vadd.f32 %v145, %v190
  %192 = vdwg.mxu0
  %193 = vmatpush.msra.mxu0 0.0
  %194 = vmatpush.msra.mxu0 0.0
  %195 = vmatpush.msra.mxu0 0.0
  %196 = vmatpush.msra.mxu0 0.0
  %197 = vmatpush.msra.mxu0 0.0
  %198 = vmatpush.msra.mxu0 0.0
  %199 = vmatpush.msra.mxu0 0.0
  %200 = vmatpush.msra.mxu0 0.0
  %201 = vmatpush.msra.mxu0 0.0
  %202 = vmatpush.msra.mxu0 0.0
  %203 = vmatpush.msra.mxu0 0.0
  %v204 = vand.u32 %v38, 4294901760
  %v205 = vsub.f32 %v38, %v204
  %206 = vmatpush.msra.mxu0 %v205
  %v207 = vand.u32 %v104, 4294901760
  %v208 = vsub.f32 %v104, %v207
  %209 = vmatpush.msra.mxu0 %v208
  %v210 = vand.u32 %v90, 4294901760
  %v211 = vsub.f32 %v90, %v210
  %212 = vmatpush.msra.mxu0 %v211
  %v213 = vand.u32 %v76, 4294901760
  %v214 = vsub.f32 %v76, %v213
  %215 = vmatpush.msra.mxu0 %v214
  %v216 = vand.u32 %v62, 4294901760
  %v217 = vsub.f32 %v62, %v216
  %218 = vmatpush.msra.mxu0 %v217
  %v219 = vand.u32 %v115, 4294901760
  %v220 = vsub.f32 %v115, %v219
  %221 = vmatmul.f32.gmra.mxu0 %v220
  %v222 = vpop.f32.mrf.mxu0
  %v223 = vadd.f32 %v191, %v222
  %224 = vdwg.mxu0
  %225 = vmatpush.msra.mxu0 0.0
  %226 = vmatpush.msra.mxu0 0.0
  %227 = vmatpush.msra.mxu0 0.0
  %228 = vmatpush.msra.mxu0 0.0
  %229 = vmatpush.msra.mxu0 0.0
  %230 = vmatpush.msra.mxu0 0.0
  %231 = vmatpush.msra.mxu0 0.0
  %232 = vmatpush.msra.mxu0 0.0
  %233 = vmatpush.msra.mxu0 0.0
  %234 = vmatpush.msra.mxu0 0.0
  %235 = vmatpush.msra.mxu0 0.0
  %v236 = vand.u32 %v38, 4294901760
  %237 = vmatpush.msra.mxu0 %v236
  %v238 = vand.u32 %v104, 4294901760
  %239 = vmatpush.msra.mxu0 %v238
  %v240 = vand.u32 %v90, 4294901760
  %241 = vmatpush.msra.mxu0 %v240
  %v242 = vand.u32 %v76, 4294901760
  %243 = vmatpush.msra.mxu0 %v242
  %v244 = vand.u32 %v62, 4294901760
  %245 = vmatpush.msra.mxu0 %v244
  %v246 = vand.u32 %v115, 4294901760
  %v247 = vsub.f32 %v115, %v246
  %v248 = vand.u32 %v247, 4294901760
  %249 = vmatmul.f32.gmra.mxu0 %v248
  %v250 = vpop.f32.mrf.mxu0
  %v251 = vadd.f32 %v223, %v250
  %252 = vdwg.mxu0
  %253 = vmatpush.msra.mxu0 0.0
  %254 = vmatpush.msra.mxu0 0.0
  %255 = vmatpush.msra.mxu0 0.0
  %256 = vmatpush.msra.mxu0 0.0
  %257 = vmatpush.msra.mxu0 0.0
  %258 = vmatpush.msra.mxu0 0.0
  %259 = vmatpush.msra.mxu0 0.0
  %260 = vmatpush.msra.mxu0 0.0
  %261 = vmatpush.msra.mxu0 0.0
  %262 = vmatpush.msra.mxu0 0.0
  %263 = vmatpush.msra.mxu0 0.0
  %v264 = vand.u32 %v38, 4294901760
  %v265 = vsub.f32 %v38, %v264
  %v266 = vand.u32 %v265, 4294901760
  %267 = vmatpush.msra.mxu0 %v266
  %v268 = vand.u32 %v104, 4294901760
  %v269 = vsub.f32 %v104, %v268
  %v270 = vand.u32 %v269, 4294901760
  %271 = vmatpush.msra.mxu0 %v270
  %v272 = vand.u32 %v90, 4294901760
  %v273 = vsub.f32 %v90, %v272
  %v274 = vand.u32 %v273, 4294901760
  %275 = vmatpush.msra.mxu0 %v274
  %v276 = vand.u32 %v76, 4294901760
  %v277 = vsub.f32 %v76, %v276
  %v278 = vand.u32 %v277, 4294901760
  %279 = vmatpush.msra.mxu0 %v278
  %v280 = vand.u32 %v62, 4294901760
  %v281 = vsub.f32 %v62, %v280
  %v282 = vand.u32 %v281, 4294901760
  %283 = vmatpush.msra.mxu0 %v282
  %v284 = vand.u32 %v115, 4294901760
  %285 = vmatmul.f32.gmra.mxu0 %v284
  %v286 = vpop.f32.mrf.mxu0
  %v287 = vadd.f32 %v251, %v286
  %288 = vdwg.mxu0
  %289 = vmatpush.msra.mxu0 0.0
  %290 = vmatpush.msra.mxu0 0.0
  %291 = vmatpush.msra.mxu0 0.0
  %292 = vmatpush.msra.mxu0 0.0
  %293 = vmatpush.msra.mxu0 0.0
  %294 = vmatpush.msra.mxu0 0.0
  %295 = vmatpush.msra.mxu0 0.0
  %296 = vmatpush.msra.mxu0 0.0
  %297 = vmatpush.msra.mxu0 0.0
  %298 = vmatpush.msra.mxu0 0.0
  %299 = vmatpush.msra.mxu0 0.0
  %v300 = vand.u32 %v38, 4294901760
  %301 = vmatpush.msra.mxu0 %v300
  %v302 = vand.u32 %v104, 4294901760
  %303 = vmatpush.msra.mxu0 %v302
  %v304 = vand.u32 %v90, 4294901760
  %305 = vmatpush.msra.mxu0 %v304
  %v306 = vand.u32 %v76, 4294901760
  %307 = vmatpush.msra.mxu0 %v306
  %v308 = vand.u32 %v62, 4294901760
  %309 = vmatpush.msra.mxu0 %v308
  %v310 = vand.u32 %v115, 4294901760
  %311 = vmatmul.f32.gmra.mxu0 %v310
  %v312 = vpop.f32.mrf.mxu0
  %v313 = vadd.f32 %v287, %v312
  %314 = vdwg.mxu0
  %315 = vmatpush.msra.mxu0 0.0
  %316 = vmatpush.msra.mxu0 0.0
  %317 = vmatpush.msra.mxu0 0.0
  %318 = vmatpush.msra.mxu0 0.0
  %319 = vmatpush.msra.mxu0 0.0
  %320 = vmatpush.msra.mxu0 0.0
  %321 = vmatpush.msra.mxu0 0.0
  %322 = vmatpush.msra.mxu0 0.0
  %323 = vmatpush.msra.mxu0 0.0
  %324 = vmatpush.msra.mxu0 0.0
  %325 = vmatpush.msra.mxu0 0.0
  %v326 = vand.u32 %v39, 4294901760
  %327 = vmatpush.msra.mxu0 %v326
  %v328 = vand.u32 %v105, 4294901760
  %329 = vmatpush.msra.mxu0 %v328
  %v330 = vand.u32 %v91, 4294901760
  %331 = vmatpush.msra.mxu0 %v330
  %v332 = vand.u32 %v77, 4294901760
  %333 = vmatpush.msra.mxu0 %v332
  %v334 = vand.u32 %v63, 4294901760
  %335 = vmatpush.msra.mxu0 %v334
  %v336 = vand.u32 %v115, 4294901760
  %v337 = vsub.f32 %v115, %v336
  %v338 = vand.u32 %v337, 4294901760
  %v339 = vsub.f32 %v337, %v338
  %v340 = vand.u32 %v339, 4294901760
  %341 = vmatmul.f32.gmra.mxu0 %v340
  %v342 = vpop.f32.mrf.mxu0
  %v343 = vadd.f32 %v111, %v342
  %344 = vdwg.mxu0
  %345 = vmatpush.msra.mxu0 0.0
  %346 = vmatpush.msra.mxu0 0.0
  %347 = vmatpush.msra.mxu0 0.0
  %348 = vmatpush.msra.mxu0 0.0
  %349 = vmatpush.msra.mxu0 0.0
  %350 = vmatpush.msra.mxu0 0.0
  %351 = vmatpush.msra.mxu0 0.0
  %352 = vmatpush.msra.mxu0 0.0
  %353 = vmatpush.msra.mxu0 0.0
  %354 = vmatpush.msra.mxu0 0.0
  %355 = vmatpush.msra.mxu0 0.0
  %v356 = vand.u32 %v39, 4294901760
  %v357 = vsub.f32 %v39, %v356
  %v358 = vand.u32 %v357, 4294901760
  %v359 = vsub.f32 %v357, %v358
  %v360 = vand.u32 %v359, 4294901760
  %361 = vmatpush.msra.mxu0 %v360
  %v362 = vand.u32 %v105, 4294901760
  %v363 = vsub.f32 %v105, %v362
  %v364 = vand.u32 %v363, 4294901760
  %v365 = vsub.f32 %v363, %v364
  %v366 = vand.u32 %v365, 4294901760
  %367 = vmatpush.msra.mxu0 %v366
  %v368 = vand.u32 %v91, 4294901760
  %v369 = vsub.f32 %v91, %v368
  %v370 = vand.u32 %v369, 4294901760
  %v371 = vsub.f32 %v369, %v370
  %v372 = vand.u32 %v371, 4294901760
  %373 = vmatpush.msra.mxu0 %v372
  %v374 = vand.u32 %v77, 4294901760
  %v375 = vsub.f32 %v77, %v374
  %v376 = vand.u32 %v375, 4294901760
  %v377 = vsub.f32 %v375, %v376
  %v378 = vand.u32 %v377, 4294901760
  %379 = vmatpush.msra.mxu0 %v378
  %v380 = vand.u32 %v63, 4294901760
  %v381 = vsub.f32 %v63, %v380
  %v382 = vand.u32 %v381, 4294901760
  %v383 = vsub.f32 %v381, %v382
  %v384 = vand.u32 %v383, 4294901760
  %385 = vmatpush.msra.mxu0 %v384
  %v386 = vand.u32 %v115, 4294901760
  %387 = vmatmul.f32.gmra.mxu0 %v386
  %v388 = vpop.f32.mrf.mxu0
  %v389 = vadd.f32 %v343, %v388
  %390 = vdwg.mxu0
  %391 = vmatpush.msra.mxu0 0.0
  %392 = vmatpush.msra.mxu0 0.0
  %393 = vmatpush.msra.mxu0 0.0
  %394 = vmatpush.msra.mxu0 0.0
  %395 = vmatpush.msra.mxu0 0.0
  %396 = vmatpush.msra.mxu0 0.0
  %397 = vmatpush.msra.mxu0 0.0
  %398 = vmatpush.msra.mxu0 0.0
  %399 = vmatpush.msra.mxu0 0.0
  %400 = vmatpush.msra.mxu0 0.0
  %401 = vmatpush.msra.mxu0 0.0
  %v402 = vand.u32 %v39, 4294901760
  %v403 = vsub.f32 %v39, %v402
  %404 = vmatpush.msra.mxu0 %v403
  %v405 = vand.u32 %v105, 4294901760
  %v406 = vsub.f32 %v105, %v405
  %407 = vmatpush.msra.mxu0 %v406
  %v408 = vand.u32 %v91, 4294901760
  %v409 = vsub.f32 %v91, %v408
  %410 = vmatpush.msra.mxu0 %v409
  %v411 = vand.u32 %v77, 4294901760
  %v412 = vsub.f32 %v77, %v411
  %413 = vmatpush.msra.mxu0 %v412
  %v414 = vand.u32 %v63, 4294901760
  %v415 = vsub.f32 %v63, %v414
  %416 = vmatpush.msra.mxu0 %v415
  %v417 = vand.u32 %v115, 4294901760
  %v418 = vsub.f32 %v115, %v417
  %419 = vmatmul.f32.gmra.mxu0 %v418
  %v420 = vpop.f32.mrf.mxu0
  %v421 = vadd.f32 %v389, %v420
  %422 = vdwg.mxu0
  %423 = vmatpush.msra.mxu0 0.0
  %424 = vmatpush.msra.mxu0 0.0
  %425 = vmatpush.msra.mxu0 0.0
  %426 = vmatpush.msra.mxu0 0.0
  %427 = vmatpush.msra.mxu0 0.0
  %428 = vmatpush.msra.mxu0 0.0
  %429 = vmatpush.msra.mxu0 0.0
  %430 = vmatpush.msra.mxu0 0.0
  %431 = vmatpush.msra.mxu0 0.0
  %432 = vmatpush.msra.mxu0 0.0
  %433 = vmatpush.msra.mxu0 0.0
  %v434 = vand.u32 %v39, 4294901760
  %435 = vmatpush.msra.mxu0 %v434
  %v436 = vand.u32 %v105, 4294901760
  %437 = vmatpush.msra.mxu0 %v436
  %v438 = vand.u32 %v91, 4294901760
  %439 = vmatpush.msra.mxu0 %v438
  %v440 = vand.u32 %v77, 4294901760
  %441 = vmatpush.msra.mxu0 %v440
  %v442 = vand.u32 %v63, 4294901760
  %443 = vmatpush.msra.mxu0 %v442
  %v444 = vand.u32 %v115, 4294901760
  %v445 = vsub.f32 %v115, %v444
  %v446 = vand.u32 %v445, 4294901760
  %447 = vmatmul.f32.gmra.mxu0 %v446
  %v448 = vpop.f32.mrf.mxu0
  %v449 = vadd.f32 %v421, %v448
  %450 = vdwg.mxu0
  %451 = vmatpush.msra.mxu0 0.0
  %452 = vmatpush.msra.mxu0 0.0
  %453 = vmatpush.msra.mxu0 0.0
  %454 = vmatpush.msra.mxu0 0.0
  %455 = vmatpush.msra.mxu0 0.0
  %456 = vmatpush.msra.mxu0 0.0
  %457 = vmatpush.msra.mxu0 0.0
  %458 = vmatpush.msra.mxu0 0.0
  %459 = vmatpush.msra.mxu0 0.0
  %460 = vmatpush.msra.mxu0 0.0
  %461 = vmatpush.msra.mxu0 0.0
  %v462 = vand.u32 %v39, 4294901760
  %v463 = vsub.f32 %v39, %v462
  %v464 = vand.u32 %v463, 4294901760
  %465 = vmatpush.msra.mxu0 %v464
  %v466 = vand.u32 %v105, 4294901760
  %v467 = vsub.f32 %v105, %v466
  %v468 = vand.u32 %v467, 4294901760
  %469 = vmatpush.msra.mxu0 %v468
  %v470 = vand.u32 %v91, 4294901760
  %v471 = vsub.f32 %v91, %v470
  %v472 = vand.u32 %v471, 4294901760
  %473 = vmatpush.msra.mxu0 %v472
  %v474 = vand.u32 %v77, 4294901760
  %v475 = vsub.f32 %v77, %v474
  %v476 = vand.u32 %v475, 4294901760
  %477 = vmatpush.msra.mxu0 %v476
  %v478 = vand.u32 %v63, 4294901760
  %v479 = vsub.f32 %v63, %v478
  %v480 = vand.u32 %v479, 4294901760
  %481 = vmatpush.msra.mxu0 %v480
  %v482 = vand.u32 %v115, 4294901760
  %483 = vmatmul.f32.gmra.mxu0 %v482
  %v484 = vpop.f32.mrf.mxu0
  %v485 = vadd.f32 %v449, %v484
  %486 = vdwg.mxu0
  %487 = vmatpush.msra.mxu0 0.0
  %488 = vmatpush.msra.mxu0 0.0
  %489 = vmatpush.msra.mxu0 0.0
  %490 = vmatpush.msra.mxu0 0.0
  %491 = vmatpush.msra.mxu0 0.0
  %492 = vmatpush.msra.mxu0 0.0
  %493 = vmatpush.msra.mxu0 0.0
  %494 = vmatpush.msra.mxu0 0.0
  %495 = vmatpush.msra.mxu0 0.0
  %496 = vmatpush.msra.mxu0 0.0
  %497 = vmatpush.msra.mxu0 0.0
  %v498 = vand.u32 %v39, 4294901760
  %499 = vmatpush.msra.mxu0 %v498
  %v500 = vand.u32 %v105, 4294901760
  %501 = vmatpush.msra.mxu0 %v500
  %v502 = vand.u32 %v91, 4294901760
  %503 = vmatpush.msra.mxu0 %v502
  %v504 = vand.u32 %v77, 4294901760
  %505 = vmatpush.msra.mxu0 %v504
  %v506 = vand.u32 %v63, 4294901760
  %507 = vmatpush.msra.mxu0 %v506
  %v508 = vand.u32 %v115, 4294901760
  %509 = vmatmul.f32.gmra.mxu0 %v508
  %v510 = vpop.f32.mrf.mxu0
  %v511 = vadd.f32 %v485, %v510
  %512 = vdwg.mxu0
  %vm513 = vcmask 64512
  %v515 = vsel %vm513, %v40, 0
  %517 = vmatpush.msra.mxu0 0.0
  %518 = vmatpush.msra.mxu0 0.0
  %519 = vmatpush.msra.mxu0 0.0
  %520 = vmatpush.msra.mxu0 0.0
  %521 = vmatpush.msra.mxu0 0.0
  %522 = vmatpush.msra.mxu0 0.0
  %523 = vmatpush.msra.mxu0 0.0
  %524 = vmatpush.msra.mxu0 0.0
  %525 = vmatpush.msra.mxu0 0.0
  %526 = vmatpush.msra.mxu0 0.0
  %527 = vmatpush.msra.mxu0 0.0
  %528 = vmatpush.msra.mxu0 0.0
  %529 = vmatpush.msra.mxu0 0.0
  %530 = vmatpush.msra.mxu0 0.0
  %531 = vmatpush.msra.mxu0 0.0
  %v532 = vand.u32 %v313, 4294901760
  %533 = vmatpush.msra.mxu0 %v532
  %v534 = vand.u32 %v515, 4294901760
  %v535 = vsub.f32 %v515, %v534
  %v536 = vand.u32 %v535, 4294901760
  %v537 = vsub.f32 %v535, %v536
  %v538 = vand.u32 %v537, 4294901760
  %539 = vmatmul.f32.gmra.mxu0 %v538
  %v540 = vpop.f32.mrf.mxu0
  %v541 = vadd.f32 0.0, %v540
  %542 = vdwg.mxu0
  %543 = vmatpush.msra.mxu0 0.0
  %544 = vmatpush.msra.mxu0 0.0
  %545 = vmatpush.msra.mxu0 0.0
  %546 = vmatpush.msra.mxu0 0.0
  %547 = vmatpush.msra.mxu0 0.0
  %548 = vmatpush.msra.mxu0 0.0
  %549 = vmatpush.msra.mxu0 0.0
  %550 = vmatpush.msra.mxu0 0.0
  %551 = vmatpush.msra.mxu0 0.0
  %552 = vmatpush.msra.mxu0 0.0
  %553 = vmatpush.msra.mxu0 0.0
  %554 = vmatpush.msra.mxu0 0.0
  %555 = vmatpush.msra.mxu0 0.0
  %556 = vmatpush.msra.mxu0 0.0
  %557 = vmatpush.msra.mxu0 0.0
  %v558 = vand.u32 %v313, 4294901760
  %v559 = vsub.f32 %v313, %v558
  %v560 = vand.u32 %v559, 4294901760
  %v561 = vsub.f32 %v559, %v560
  %v562 = vand.u32 %v561, 4294901760
  %563 = vmatpush.msra.mxu0 %v562
  %v564 = vand.u32 %v515, 4294901760
  %565 = vmatmul.f32.gmra.mxu0 %v564
  %v566 = vpop.f32.mrf.mxu0
  %v567 = vadd.f32 %v541, %v566
  %568 = vdwg.mxu0
  %569 = vmatpush.msra.mxu0 0.0
  %570 = vmatpush.msra.mxu0 0.0
  %571 = vmatpush.msra.mxu0 0.0
  %572 = vmatpush.msra.mxu0 0.0
  %573 = vmatpush.msra.mxu0 0.0
  %574 = vmatpush.msra.mxu0 0.0
  %575 = vmatpush.msra.mxu0 0.0
  %576 = vmatpush.msra.mxu0 0.0
  %577 = vmatpush.msra.mxu0 0.0
  %578 = vmatpush.msra.mxu0 0.0
  %579 = vmatpush.msra.mxu0 0.0
  %580 = vmatpush.msra.mxu0 0.0
  %581 = vmatpush.msra.mxu0 0.0
  %582 = vmatpush.msra.mxu0 0.0
  %583 = vmatpush.msra.mxu0 0.0
  %v584 = vand.u32 %v313, 4294901760
  %v585 = vsub.f32 %v313, %v584
  %586 = vmatpush.msra.mxu0 %v585
  %v587 = vand.u32 %v515, 4294901760
  %v588 = vsub.f32 %v515, %v587
  %589 = vmatmul.f32.gmra.mxu0 %v588
  %v590 = vpop.f32.mrf.mxu0
  %v591 = vadd.f32 %v567, %v590
  %592 = vdwg.mxu0
  %593 = vmatpush.msra.mxu0 0.0
  %594 = vmatpush.msra.mxu0 0.0
  %595 = vmatpush.msra.mxu0 0.0
  %596 = vmatpush.msra.mxu0 0.0
  %597 = vmatpush.msra.mxu0 0.0
  %598 = vmatpush.msra.mxu0 0.0
  %599 = vmatpush.msra.mxu0 0.0
  %600 = vmatpush.msra.mxu0 0.0
  %601 = vmatpush.msra.mxu0 0.0
  %602 = vmatpush.msra.mxu0 0.0
  %603 = vmatpush.msra.mxu0 0.0
  %604 = vmatpush.msra.mxu0 0.0
  %605 = vmatpush.msra.mxu0 0.0
  %606 = vmatpush.msra.mxu0 0.0
  %607 = vmatpush.msra.mxu0 0.0
  %v608 = vand.u32 %v313, 4294901760
  %609 = vmatpush.msra.mxu0 %v608
  %v610 = vand.u32 %v515, 4294901760
  %v611 = vsub.f32 %v515, %v610
  %v612 = vand.u32 %v611, 4294901760
  %613 = vmatmul.f32.gmra.mxu0 %v612
  %v614 = vpop.f32.mrf.mxu0
  %v615 = vadd.f32 %v591, %v614
  %616 = vdwg.mxu0
  %617 = vmatpush.msra.mxu0 0.0
  %618 = vmatpush.msra.mxu0 0.0
  %619 = vmatpush.msra.mxu0 0.0
  %620 = vmatpush.msra.mxu0 0.0
  %621 = vmatpush.msra.mxu0 0.0
  %622 = vmatpush.msra.mxu0 0.0
  %623 = vmatpush.msra.mxu0 0.0
  %624 = vmatpush.msra.mxu0 0.0
  %625 = vmatpush.msra.mxu0 0.0
  %626 = vmatpush.msra.mxu0 0.0
  %627 = vmatpush.msra.mxu0 0.0
  %628 = vmatpush.msra.mxu0 0.0
  %629 = vmatpush.msra.mxu0 0.0
  %630 = vmatpush.msra.mxu0 0.0
  %631 = vmatpush.msra.mxu0 0.0
  %v632 = vand.u32 %v313, 4294901760
  %v633 = vsub.f32 %v313, %v632
  %v634 = vand.u32 %v633, 4294901760
  %635 = vmatpush.msra.mxu0 %v634
  %v636 = vand.u32 %v515, 4294901760
  %637 = vmatmul.f32.gmra.mxu0 %v636
  %v638 = vpop.f32.mrf.mxu0
  %v639 = vadd.f32 %v615, %v638
  %640 = vdwg.mxu0
  %641 = vmatpush.msra.mxu0 0.0
  %642 = vmatpush.msra.mxu0 0.0
  %643 = vmatpush.msra.mxu0 0.0
  %644 = vmatpush.msra.mxu0 0.0
  %645 = vmatpush.msra.mxu0 0.0
  %646 = vmatpush.msra.mxu0 0.0
  %647 = vmatpush.msra.mxu0 0.0
  %648 = vmatpush.msra.mxu0 0.0
  %649 = vmatpush.msra.mxu0 0.0
  %650 = vmatpush.msra.mxu0 0.0
  %651 = vmatpush.msra.mxu0 0.0
  %652 = vmatpush.msra.mxu0 0.0
  %653 = vmatpush.msra.mxu0 0.0
  %654 = vmatpush.msra.mxu0 0.0
  %655 = vmatpush.msra.mxu0 0.0
  %v656 = vand.u32 %v313, 4294901760
  %657 = vmatpush.msra.mxu0 %v656
  %v658 = vand.u32 %v515, 4294901760
  %659 = vmatmul.f32.gmra.mxu0 %v658
  %v660 = vpop.f32.mrf.mxu0
  %v661 = vadd.f32 %v639, %v660
  %662 = vdwg.mxu0
  %663 = vmatpush.msra.mxu0 0.0
  %664 = vmatpush.msra.mxu0 0.0
  %665 = vmatpush.msra.mxu0 0.0
  %666 = vmatpush.msra.mxu0 0.0
  %667 = vmatpush.msra.mxu0 0.0
  %668 = vmatpush.msra.mxu0 0.0
  %669 = vmatpush.msra.mxu0 0.0
  %670 = vmatpush.msra.mxu0 0.0
  %671 = vmatpush.msra.mxu0 0.0
  %672 = vmatpush.msra.mxu0 0.0
  %673 = vmatpush.msra.mxu0 0.0
  %674 = vmatpush.msra.mxu0 0.0
  %675 = vmatpush.msra.mxu0 0.0
  %676 = vmatpush.msra.mxu0 0.0
  %677 = vmatpush.msra.mxu0 0.0
  %v678 = vand.u32 %v511, 4294901760
  %679 = vmatpush.msra.mxu0 %v678
  %v680 = vand.u32 %v515, 4294901760
  %v681 = vsub.f32 %v515, %v680
  %v682 = vand.u32 %v681, 4294901760
  %v683 = vsub.f32 %v681, %v682
  %v684 = vand.u32 %v683, 4294901760
  %685 = vmatmul.f32.gmra.mxu0 %v684
  %v686 = vpop.f32.mrf.mxu0
  %v687 = vadd.f32 0.0, %v686
  %688 = vdwg.mxu0
  %689 = vmatpush.msra.mxu0 0.0
  %690 = vmatpush.msra.mxu0 0.0
  %691 = vmatpush.msra.mxu0 0.0
  %692 = vmatpush.msra.mxu0 0.0
  %693 = vmatpush.msra.mxu0 0.0
  %694 = vmatpush.msra.mxu0 0.0
  %695 = vmatpush.msra.mxu0 0.0
  %696 = vmatpush.msra.mxu0 0.0
  %697 = vmatpush.msra.mxu0 0.0
  %698 = vmatpush.msra.mxu0 0.0
  %699 = vmatpush.msra.mxu0 0.0
  %700 = vmatpush.msra.mxu0 0.0
  %701 = vmatpush.msra.mxu0 0.0
  %702 = vmatpush.msra.mxu0 0.0
  %703 = vmatpush.msra.mxu0 0.0
  %v704 = vand.u32 %v511, 4294901760
  %v705 = vsub.f32 %v511, %v704
  %v706 = vand.u32 %v705, 4294901760
  %v707 = vsub.f32 %v705, %v706
  %v708 = vand.u32 %v707, 4294901760
  %709 = vmatpush.msra.mxu0 %v708
  %v710 = vand.u32 %v515, 4294901760
  %711 = vmatmul.f32.gmra.mxu0 %v710
  %v712 = vpop.f32.mrf.mxu0
  %v713 = vadd.f32 %v687, %v712
  %714 = vdwg.mxu0
  %715 = vmatpush.msra.mxu0 0.0
  %716 = vmatpush.msra.mxu0 0.0
  %717 = vmatpush.msra.mxu0 0.0
  %718 = vmatpush.msra.mxu0 0.0
  %719 = vmatpush.msra.mxu0 0.0
  %720 = vmatpush.msra.mxu0 0.0
  %721 = vmatpush.msra.mxu0 0.0
  %722 = vmatpush.msra.mxu0 0.0
  %723 = vmatpush.msra.mxu0 0.0
  %724 = vmatpush.msra.mxu0 0.0
  %725 = vmatpush.msra.mxu0 0.0
  %726 = vmatpush.msra.mxu0 0.0
  %727 = vmatpush.msra.mxu0 0.0
  %728 = vmatpush.msra.mxu0 0.0
  %729 = vmatpush.msra.mxu0 0.0
  %v730 = vand.u32 %v511, 4294901760
  %v731 = vsub.f32 %v511, %v730
  %732 = vmatpush.msra.mxu0 %v731
  %v733 = vand.u32 %v515, 4294901760
  %v734 = vsub.f32 %v515, %v733
  %735 = vmatmul.f32.gmra.mxu0 %v734
  %v736 = vpop.f32.mrf.mxu0
  %v737 = vadd.f32 %v713, %v736
  %738 = vdwg.mxu0
  %739 = vmatpush.msra.mxu0 0.0
  %740 = vmatpush.msra.mxu0 0.0
  %741 = vmatpush.msra.mxu0 0.0
  %742 = vmatpush.msra.mxu0 0.0
  %743 = vmatpush.msra.mxu0 0.0
  %744 = vmatpush.msra.mxu0 0.0
  %745 = vmatpush.msra.mxu0 0.0
  %746 = vmatpush.msra.mxu0 0.0
  %747 = vmatpush.msra.mxu0 0.0
  %748 = vmatpush.msra.mxu0 0.0
  %749 = vmatpush.msra.mxu0 0.0
  %750 = vmatpush.msra.mxu0 0.0
  %751 = vmatpush.msra.mxu0 0.0
  %752 = vmatpush.msra.mxu0 0.0
  %753 = vmatpush.msra.mxu0 0.0
  %v754 = vand.u32 %v511, 4294901760
  %755 = vmatpush.msra.mxu0 %v754
  %v756 = vand.u32 %v515, 4294901760
  %v757 = vsub.f32 %v515, %v756
  %v758 = vand.u32 %v757, 4294901760
  %759 = vmatmul.f32.gmra.mxu0 %v758
  %v760 = vpop.f32.mrf.mxu0
  %v761 = vadd.f32 %v737, %v760
  %762 = vdwg.mxu0
  %763 = vmatpush.msra.mxu0 0.0
  %764 = vmatpush.msra.mxu0 0.0
  %765 = vmatpush.msra.mxu0 0.0
  %766 = vmatpush.msra.mxu0 0.0
  %767 = vmatpush.msra.mxu0 0.0
  %768 = vmatpush.msra.mxu0 0.0
  %769 = vmatpush.msra.mxu0 0.0
  %770 = vmatpush.msra.mxu0 0.0
  %771 = vmatpush.msra.mxu0 0.0
  %772 = vmatpush.msra.mxu0 0.0
  %773 = vmatpush.msra.mxu0 0.0
  %774 = vmatpush.msra.mxu0 0.0
  %775 = vmatpush.msra.mxu0 0.0
  %776 = vmatpush.msra.mxu0 0.0
  %777 = vmatpush.msra.mxu0 0.0
  %v778 = vand.u32 %v511, 4294901760
  %v779 = vsub.f32 %v511, %v778
  %v780 = vand.u32 %v779, 4294901760
  %781 = vmatpush.msra.mxu0 %v780
  %v782 = vand.u32 %v515, 4294901760
  %783 = vmatmul.f32.gmra.mxu0 %v782
  %v784 = vpop.f32.mrf.mxu0
  %v785 = vadd.f32 %v761, %v784
  %786 = vdwg.mxu0
  %787 = vmatpush.msra.mxu0 0.0
  %788 = vmatpush.msra.mxu0 0.0
  %789 = vmatpush.msra.mxu0 0.0
  %790 = vmatpush.msra.mxu0 0.0
  %791 = vmatpush.msra.mxu0 0.0
  %792 = vmatpush.msra.mxu0 0.0
  %793 = vmatpush.msra.mxu0 0.0
  %794 = vmatpush.msra.mxu0 0.0
  %795 = vmatpush.msra.mxu0 0.0
  %796 = vmatpush.msra.mxu0 0.0
  %797 = vmatpush.msra.mxu0 0.0
  %798 = vmatpush.msra.mxu0 0.0
  %799 = vmatpush.msra.mxu0 0.0
  %800 = vmatpush.msra.mxu0 0.0
  %801 = vmatpush.msra.mxu0 0.0
  %v802 = vand.u32 %v511, 4294901760
  %803 = vmatpush.msra.mxu0 %v802
  %v804 = vand.u32 %v515, 4294901760
  %805 = vmatmul.f32.gmra.mxu0 %v804
  %v806 = vpop.f32.mrf.mxu0
  %v807 = vadd.f32 %v785, %v806
  %808 = vdwg.mxu0
  %v809 = vmul.f32 %v313, %v313
  %v810 = vmul.f32 %v511, %v511
  %811 = vmatpush.msra.mxu0 0.0
  %812 = vmatpush.msra.mxu0 0.0
  %813 = vmatpush.msra.mxu0 0.0
  %814 = vmatpush.msra.mxu0 0.0
  %815 = vmatpush.msra.mxu0 0.0
  %816 = vmatpush.msra.mxu0 0.0
  %817 = vmatpush.msra.mxu0 0.0
  %818 = vmatpush.msra.mxu0 0.0
  %819 = vmatpush.msra.mxu0 0.0
  %820 = vmatpush.msra.mxu0 0.0
  %821 = vmatpush.msra.mxu0 0.0
  %822 = vmatpush.msra.mxu0 0.0
  %823 = vmatpush.msra.mxu0 0.0
  %824 = vmatpush.msra.mxu0 0.0
  %825 = vmatpush.msra.mxu0 0.0
  %v826 = vand.u32 %v809, 4294901760
  %827 = vmatpush.msra.mxu0 %v826
  %v828 = vand.u32 %v515, 4294901760
  %v829 = vsub.f32 %v515, %v828
  %v830 = vand.u32 %v829, 4294901760
  %v831 = vsub.f32 %v829, %v830
  %v832 = vand.u32 %v831, 4294901760
  %833 = vmatmul.f32.gmra.mxu0 %v832
  %v834 = vpop.f32.mrf.mxu0
  %v835 = vadd.f32 0.0, %v834
  %836 = vdwg.mxu0
  %837 = vmatpush.msra.mxu0 0.0
  %838 = vmatpush.msra.mxu0 0.0
  %839 = vmatpush.msra.mxu0 0.0
  %840 = vmatpush.msra.mxu0 0.0
  %841 = vmatpush.msra.mxu0 0.0
  %842 = vmatpush.msra.mxu0 0.0
  %843 = vmatpush.msra.mxu0 0.0
  %844 = vmatpush.msra.mxu0 0.0
  %845 = vmatpush.msra.mxu0 0.0
  %846 = vmatpush.msra.mxu0 0.0
  %847 = vmatpush.msra.mxu0 0.0
  %848 = vmatpush.msra.mxu0 0.0
  %849 = vmatpush.msra.mxu0 0.0
  %850 = vmatpush.msra.mxu0 0.0
  %851 = vmatpush.msra.mxu0 0.0
  %v852 = vand.u32 %v809, 4294901760
  %v853 = vsub.f32 %v809, %v852
  %v854 = vand.u32 %v853, 4294901760
  %v855 = vsub.f32 %v853, %v854
  %v856 = vand.u32 %v855, 4294901760
  %857 = vmatpush.msra.mxu0 %v856
  %v858 = vand.u32 %v515, 4294901760
  %859 = vmatmul.f32.gmra.mxu0 %v858
  %v860 = vpop.f32.mrf.mxu0
  %v861 = vadd.f32 %v835, %v860
  %862 = vdwg.mxu0
  %863 = vmatpush.msra.mxu0 0.0
  %864 = vmatpush.msra.mxu0 0.0
  %865 = vmatpush.msra.mxu0 0.0
  %866 = vmatpush.msra.mxu0 0.0
  %867 = vmatpush.msra.mxu0 0.0
  %868 = vmatpush.msra.mxu0 0.0
  %869 = vmatpush.msra.mxu0 0.0
  %870 = vmatpush.msra.mxu0 0.0
  %871 = vmatpush.msra.mxu0 0.0
  %872 = vmatpush.msra.mxu0 0.0
  %873 = vmatpush.msra.mxu0 0.0
  %874 = vmatpush.msra.mxu0 0.0
  %875 = vmatpush.msra.mxu0 0.0
  %876 = vmatpush.msra.mxu0 0.0
  %877 = vmatpush.msra.mxu0 0.0
  %v878 = vand.u32 %v809, 4294901760
  %v879 = vsub.f32 %v809, %v878
  %880 = vmatpush.msra.mxu0 %v879
  %v881 = vand.u32 %v515, 4294901760
  %v882 = vsub.f32 %v515, %v881
  %883 = vmatmul.f32.gmra.mxu0 %v882
  %v884 = vpop.f32.mrf.mxu0
  %v885 = vadd.f32 %v861, %v884
  %886 = vdwg.mxu0
  %887 = vmatpush.msra.mxu0 0.0
  %888 = vmatpush.msra.mxu0 0.0
  %889 = vmatpush.msra.mxu0 0.0
  %890 = vmatpush.msra.mxu0 0.0
  %891 = vmatpush.msra.mxu0 0.0
  %892 = vmatpush.msra.mxu0 0.0
  %893 = vmatpush.msra.mxu0 0.0
  %894 = vmatpush.msra.mxu0 0.0
  %895 = vmatpush.msra.mxu0 0.0
  %896 = vmatpush.msra.mxu0 0.0
  %897 = vmatpush.msra.mxu0 0.0
  %898 = vmatpush.msra.mxu0 0.0
  %899 = vmatpush.msra.mxu0 0.0
  %900 = vmatpush.msra.mxu0 0.0
  %901 = vmatpush.msra.mxu0 0.0
  %v902 = vand.u32 %v809, 4294901760
  %903 = vmatpush.msra.mxu0 %v902
  %v904 = vand.u32 %v515, 4294901760
  %v905 = vsub.f32 %v515, %v904
  %v906 = vand.u32 %v905, 4294901760
  %907 = vmatmul.f32.gmra.mxu0 %v906
  %v908 = vpop.f32.mrf.mxu0
  %v909 = vadd.f32 %v885, %v908
  %910 = vdwg.mxu0
  %911 = vmatpush.msra.mxu0 0.0
  %912 = vmatpush.msra.mxu0 0.0
  %913 = vmatpush.msra.mxu0 0.0
  %914 = vmatpush.msra.mxu0 0.0
  %915 = vmatpush.msra.mxu0 0.0
  %916 = vmatpush.msra.mxu0 0.0
  %917 = vmatpush.msra.mxu0 0.0
  %918 = vmatpush.msra.mxu0 0.0
  %919 = vmatpush.msra.mxu0 0.0
  %920 = vmatpush.msra.mxu0 0.0
  %921 = vmatpush.msra.mxu0 0.0
  %922 = vmatpush.msra.mxu0 0.0
  %923 = vmatpush.msra.mxu0 0.0
  %924 = vmatpush.msra.mxu0 0.0
  %925 = vmatpush.msra.mxu0 0.0
  %v926 = vand.u32 %v809, 4294901760
  %v927 = vsub.f32 %v809, %v926
  %v928 = vand.u32 %v927, 4294901760
  %929 = vmatpush.msra.mxu0 %v928
  %v930 = vand.u32 %v515, 4294901760
  %931 = vmatmul.f32.gmra.mxu0 %v930
  %v932 = vpop.f32.mrf.mxu0
  %v933 = vadd.f32 %v909, %v932
  %934 = vdwg.mxu0
  %935 = vmatpush.msra.mxu0 0.0
  %936 = vmatpush.msra.mxu0 0.0
  %937 = vmatpush.msra.mxu0 0.0
  %938 = vmatpush.msra.mxu0 0.0
  %939 = vmatpush.msra.mxu0 0.0
  %940 = vmatpush.msra.mxu0 0.0
  %941 = vmatpush.msra.mxu0 0.0
  %942 = vmatpush.msra.mxu0 0.0
  %943 = vmatpush.msra.mxu0 0.0
  %944 = vmatpush.msra.mxu0 0.0
  %945 = vmatpush.msra.mxu0 0.0
  %946 = vmatpush.msra.mxu0 0.0
  %947 = vmatpush.msra.mxu0 0.0
  %948 = vmatpush.msra.mxu0 0.0
  %949 = vmatpush.msra.mxu0 0.0
  %v950 = vand.u32 %v809, 4294901760
  %951 = vmatpush.msra.mxu0 %v950
  %v952 = vand.u32 %v515, 4294901760
  %953 = vmatmul.f32.gmra.mxu0 %v952
  %v954 = vpop.f32.mrf.mxu0
  %v955 = vadd.f32 %v933, %v954
  %956 = vdwg.mxu0
  %957 = vmatpush.msra.mxu0 0.0
  %958 = vmatpush.msra.mxu0 0.0
  %959 = vmatpush.msra.mxu0 0.0
  %960 = vmatpush.msra.mxu0 0.0
  %961 = vmatpush.msra.mxu0 0.0
  %962 = vmatpush.msra.mxu0 0.0
  %963 = vmatpush.msra.mxu0 0.0
  %964 = vmatpush.msra.mxu0 0.0
  %965 = vmatpush.msra.mxu0 0.0
  %966 = vmatpush.msra.mxu0 0.0
  %967 = vmatpush.msra.mxu0 0.0
  %968 = vmatpush.msra.mxu0 0.0
  %969 = vmatpush.msra.mxu0 0.0
  %970 = vmatpush.msra.mxu0 0.0
  %971 = vmatpush.msra.mxu0 0.0
  %v972 = vand.u32 %v810, 4294901760
  %973 = vmatpush.msra.mxu0 %v972
  %v974 = vand.u32 %v515, 4294901760
  %v975 = vsub.f32 %v515, %v974
  %v976 = vand.u32 %v975, 4294901760
  %v977 = vsub.f32 %v975, %v976
  %v978 = vand.u32 %v977, 4294901760
  %979 = vmatmul.f32.gmra.mxu0 %v978
  %v980 = vpop.f32.mrf.mxu0
  %v981 = vadd.f32 0.0, %v980
  %982 = vdwg.mxu0
  %983 = vmatpush.msra.mxu0 0.0
  %984 = vmatpush.msra.mxu0 0.0
  %985 = vmatpush.msra.mxu0 0.0
  %986 = vmatpush.msra.mxu0 0.0
  %987 = vmatpush.msra.mxu0 0.0
  %988 = vmatpush.msra.mxu0 0.0
  %989 = vmatpush.msra.mxu0 0.0
  %990 = vmatpush.msra.mxu0 0.0
  %991 = vmatpush.msra.mxu0 0.0
  %992 = vmatpush.msra.mxu0 0.0
  %993 = vmatpush.msra.mxu0 0.0
  %994 = vmatpush.msra.mxu0 0.0
  %995 = vmatpush.msra.mxu0 0.0
  %996 = vmatpush.msra.mxu0 0.0
  %997 = vmatpush.msra.mxu0 0.0
  %v998 = vand.u32 %v810, 4294901760
  %v999 = vsub.f32 %v810, %v998
  %v1000 = vand.u32 %v999, 4294901760
  %v1001 = vsub.f32 %v999, %v1000
  %v1002 = vand.u32 %v1001, 4294901760
  %1003 = vmatpush.msra.mxu0 %v1002
  %v1004 = vand.u32 %v515, 4294901760
  %1005 = vmatmul.f32.gmra.mxu0 %v1004
  %v1006 = vpop.f32.mrf.mxu0
  %v1007 = vadd.f32 %v981, %v1006
  %1008 = vdwg.mxu0
  %1009 = vmatpush.msra.mxu0 0.0
  %1010 = vmatpush.msra.mxu0 0.0
  %1011 = vmatpush.msra.mxu0 0.0
  %1012 = vmatpush.msra.mxu0 0.0
  %1013 = vmatpush.msra.mxu0 0.0
  %1014 = vmatpush.msra.mxu0 0.0
  %1015 = vmatpush.msra.mxu0 0.0
  %1016 = vmatpush.msra.mxu0 0.0
  %1017 = vmatpush.msra.mxu0 0.0
  %1018 = vmatpush.msra.mxu0 0.0
  %1019 = vmatpush.msra.mxu0 0.0
  %1020 = vmatpush.msra.mxu0 0.0
  %1021 = vmatpush.msra.mxu0 0.0
  %1022 = vmatpush.msra.mxu0 0.0
  %1023 = vmatpush.msra.mxu0 0.0
  %v1024 = vand.u32 %v810, 4294901760
  %v1025 = vsub.f32 %v810, %v1024
  %1026 = vmatpush.msra.mxu0 %v1025
  %v1027 = vand.u32 %v515, 4294901760
  %v1028 = vsub.f32 %v515, %v1027
  %1029 = vmatmul.f32.gmra.mxu0 %v1028
  %v1030 = vpop.f32.mrf.mxu0
  %v1031 = vadd.f32 %v1007, %v1030
  %1032 = vdwg.mxu0
  %1033 = vmatpush.msra.mxu0 0.0
  %1034 = vmatpush.msra.mxu0 0.0
  %1035 = vmatpush.msra.mxu0 0.0
  %1036 = vmatpush.msra.mxu0 0.0
  %1037 = vmatpush.msra.mxu0 0.0
  %1038 = vmatpush.msra.mxu0 0.0
  %1039 = vmatpush.msra.mxu0 0.0
  %1040 = vmatpush.msra.mxu0 0.0
  %1041 = vmatpush.msra.mxu0 0.0
  %1042 = vmatpush.msra.mxu0 0.0
  %1043 = vmatpush.msra.mxu0 0.0
  %1044 = vmatpush.msra.mxu0 0.0
  %1045 = vmatpush.msra.mxu0 0.0
  %1046 = vmatpush.msra.mxu0 0.0
  %1047 = vmatpush.msra.mxu0 0.0
  %v1048 = vand.u32 %v810, 4294901760
  %1049 = vmatpush.msra.mxu0 %v1048
  %v1050 = vand.u32 %v515, 4294901760
  %v1051 = vsub.f32 %v515, %v1050
  %v1052 = vand.u32 %v1051, 4294901760
  %1053 = vmatmul.f32.gmra.mxu0 %v1052
  %v1054 = vpop.f32.mrf.mxu0
  %v1055 = vadd.f32 %v1031, %v1054
  %1056 = vdwg.mxu0
  %1057 = vmatpush.msra.mxu0 0.0
  %1058 = vmatpush.msra.mxu0 0.0
  %1059 = vmatpush.msra.mxu0 0.0
  %1060 = vmatpush.msra.mxu0 0.0
  %1061 = vmatpush.msra.mxu0 0.0
  %1062 = vmatpush.msra.mxu0 0.0
  %1063 = vmatpush.msra.mxu0 0.0
  %1064 = vmatpush.msra.mxu0 0.0
  %1065 = vmatpush.msra.mxu0 0.0
  %1066 = vmatpush.msra.mxu0 0.0
  %1067 = vmatpush.msra.mxu0 0.0
  %1068 = vmatpush.msra.mxu0 0.0
  %1069 = vmatpush.msra.mxu0 0.0
  %1070 = vmatpush.msra.mxu0 0.0
  %1071 = vmatpush.msra.mxu0 0.0
  %v1072 = vand.u32 %v810, 4294901760
  %v1073 = vsub.f32 %v810, %v1072
  %v1074 = vand.u32 %v1073, 4294901760
  %1075 = vmatpush.msra.mxu0 %v1074
  %v1076 = vand.u32 %v515, 4294901760
  %1077 = vmatmul.f32.gmra.mxu0 %v1076
  %v1078 = vpop.f32.mrf.mxu0
  %v1079 = vadd.f32 %v1055, %v1078
  %1080 = vdwg.mxu0
  %1081 = vmatpush.msra.mxu0 0.0
  %1082 = vmatpush.msra.mxu0 0.0
  %1083 = vmatpush.msra.mxu0 0.0
  %1084 = vmatpush.msra.mxu0 0.0
  %1085 = vmatpush.msra.mxu0 0.0
  %1086 = vmatpush.msra.mxu0 0.0
  %1087 = vmatpush.msra.mxu0 0.0
  %1088 = vmatpush.msra.mxu0 0.0
  %1089 = vmatpush.msra.mxu0 0.0
  %1090 = vmatpush.msra.mxu0 0.0
  %1091 = vmatpush.msra.mxu0 0.0
  %1092 = vmatpush.msra.mxu0 0.0
  %1093 = vmatpush.msra.mxu0 0.0
  %1094 = vmatpush.msra.mxu0 0.0
  %1095 = vmatpush.msra.mxu0 0.0
  %v1096 = vand.u32 %v810, 4294901760
  %1097 = vmatpush.msra.mxu0 %v1096
  %v1098 = vand.u32 %v515, 4294901760
  %1099 = vmatmul.f32.gmra.mxu0 %v1098
  %v1100 = vpop.f32.mrf.mxu0
  %v1101 = vadd.f32 %v1079, %v1100
  %1102 = vdwg.mxu0
  %v1103 = vadd.f32 %v661, %v807
  %1104 = vadd.xlane.f32.xlu0 %v1103
  %v1105 = vpop.xlane.xlu0 %1104
  %v1106 = vmul.f32 %v1105, 0.001953125
  %v1107 = vadd.f32 %v955, %v1101
  %1108 = vadd.xlane.f32.xlu0 %v1107
  %v1109 = vpop.xlane.xlu0 %1108
  %v1110 = vmul.f32 %v1109, 0.001953125
  %v1111 = vmul.f32 %v1106, %v1106
  %v1112 = vsub.f32 %v1110, %v1111
  %v1113 = vmax.f32 %v1112, 0.0
  %v1114 = vsub.f32 %v313, %v1106
  %v1115 = vsub.f32 %v511, %v1106
  %v1116 = vadd.f32 %v1113, 1e-05
  %v1117 = vrsqrt.pop %v1116
  %v1118 = vmul.f32 %v1117, %v1116
  %v1119 = vmul.f32 %v1118, %v1117
  %v1120 = vmul.f32 0.5, %v1119
  %v1121 = vsub.f32 1.5, %v1120
  %v1122 = vmul.f32 %v1117, %v1121
  %vm1123 = vweird.f32 %v1116
  %vm1124 = vweird.f32 %v1117
  %vm1125 = vmor %vm1123, %vm1124
  %v1126 = vsel %vm1125, %v1117, %v1122
  %v1127 = vmul.f32 %v1114, %v1126
  %v1128 = vmul.f32 %v1115, %v1126
  %v1129 = vld [vmem:[%s5] sm:$0xff]
  %1131 = vset.pattern.permute.xlu0 0
  %1132 = vperm.xlu0 %1131, %v1129
  %v1133 = vpop.permute.xlu0 %1132
  %v1135 = vmul.f32 %v1127, %v1133
  %v1136 = vmul.f32 %v1128, %v1133
  %v1137 = vld [vmem:[%s6] sm:$0xff]
  %1139 = vset.pattern.permute.xlu0 0
  %1140 = vperm.xlu0 %1139, %v1137
  %v1141 = vpop.permute.xlu0 %1140
  %v1143 = vadd.f32 %v1135, %v1141
  %v1144 = vadd.f32 %v1136, %v1141
  %v1145 = vmax.f32 %v1143, 0.0
  %v1146 = vmax.f32 %v1144, 0.0
  %1147 = vrot.lane.b32.xlu0 %v1145, 17
  %v1148 = vpop.permute.xlu0 %1147
  %1149 = vrot.lane.b32.xlu0 %v1146, 17
  %v1150 = vpop.permute.xlu0 %1149
  %v1151 = vsel %vm54, %v1148, %v1150
  %v1152 = vsel %vm54, %v1150, %v1148
  %v1153 = vmul.f32 %v1152, %v58
  %v1154 = vmul.f32 %v1151, %v59
  %1155 = vrot.lane.b32.xlu0 %v1145, 16
  %v1156 = vpop.permute.xlu0 %1155
  %1157 = vrot.lane.b32.xlu0 %v1146, 16
  %v1158 = vpop.permute.xlu0 %1157
  %v1159 = vsel %vm68, %v1156, %v1158
  %v1160 = vsel %vm68, %v1158, %v1156
  %v1161 = vmul.f32 %v1160, %v72
  %v1162 = vmul.f32 %v1159, %v73
  %1163 = vrot.lane.b32.xlu0 %v1145, 15
  %v1164 = vpop.permute.xlu0 %1163
  %1165 = vrot.lane.b32.xlu0 %v1146, 15
  %v1166 = vpop.permute.xlu0 %1165
  %v1167 = vsel %vm82, %v1164, %v1166
  %v1168 = vsel %vm82, %v1166, %v1164
  %v1169 = vmul.f32 %v1168, %v86
  %v1170 = vmul.f32 %v1167, %v87
  %1171 = vrot.lane.b32.xlu0 %v1145, 1
  %v1172 = vpop.permute.xlu0 %1171
  %1173 = vrot.lane.b32.xlu0 %v1146, 1
  %v1174 = vpop.permute.xlu0 %1173
  %v1175 = vsel %vm96, %v1172, %v1174
  %v1176 = vsel %vm96, %v1174, %v1172
  %v1177 = vmul.f32 %v1176, %v100
  %v1178 = vmul.f32 %v1175, %v101
  %v1179 = vld [vmem:[%s7] sm:$0xff]
  %v1180 = vld [vmem:[%s8] sm:$0xff]
  %1182 = vset.pattern.permute.xlu0 0
  %1183 = vperm.xlu0 %1182, %v1180
  %v1184 = vpop.permute.xlu0 %1183
  %v1187 = vsel %vm113, %v1179, 0
  %1189 = vmatpush.msra.mxu0 0.0
  %1190 = vmatpush.msra.mxu0 0.0
  %1191 = vmatpush.msra.mxu0 0.0
  %1192 = vmatpush.msra.mxu0 0.0
  %1193 = vmatpush.msra.mxu0 0.0
  %1194 = vmatpush.msra.mxu0 0.0
  %1195 = vmatpush.msra.mxu0 0.0
  %1196 = vmatpush.msra.mxu0 0.0
  %1197 = vmatpush.msra.mxu0 0.0
  %1198 = vmatpush.msra.mxu0 0.0
  %1199 = vmatpush.msra.mxu0 0.0
  %v1200 = vand.u32 %v1145, 4294901760
  %1201 = vmatpush.msra.mxu0 %v1200
  %v1202 = vand.u32 %v1177, 4294901760
  %1203 = vmatpush.msra.mxu0 %v1202
  %v1204 = vand.u32 %v1169, 4294901760
  %1205 = vmatpush.msra.mxu0 %v1204
  %v1206 = vand.u32 %v1161, 4294901760
  %1207 = vmatpush.msra.mxu0 %v1206
  %v1208 = vand.u32 %v1153, 4294901760
  %1209 = vmatpush.msra.mxu0 %v1208
  %v1210 = vand.u32 %v1187, 4294901760
  %v1211 = vsub.f32 %v1187, %v1210
  %v1212 = vand.u32 %v1211, 4294901760
  %v1213 = vsub.f32 %v1211, %v1212
  %v1214 = vand.u32 %v1213, 4294901760
  %1215 = vmatmul.f32.gmra.mxu0 %v1214
  %v1216 = vpop.f32.mrf.mxu0
  %v1217 = vadd.f32 %v1184, %v1216
  %1218 = vdwg.mxu0
  %1219 = vmatpush.msra.mxu0 0.0
  %1220 = vmatpush.msra.mxu0 0.0
  %1221 = vmatpush.msra.mxu0 0.0
  %1222 = vmatpush.msra.mxu0 0.0
  %1223 = vmatpush.msra.mxu0 0.0
  %1224 = vmatpush.msra.mxu0 0.0
  %1225 = vmatpush.msra.mxu0 0.0
  %1226 = vmatpush.msra.mxu0 0.0
  %1227 = vmatpush.msra.mxu0 0.0
  %1228 = vmatpush.msra.mxu0 0.0
  %1229 = vmatpush.msra.mxu0 0.0
  %v1230 = vand.u32 %v1145, 4294901760
  %v1231 = vsub.f32 %v1145, %v1230
  %v1232 = vand.u32 %v1231, 4294901760
  %v1233 = vsub.f32 %v1231, %v1232
  %v1234 = vand.u32 %v1233, 4294901760
  %1235 = vmatpush.msra.mxu0 %v1234
  %v1236 = vand.u32 %v1177, 4294901760
  %v1237 = vsub.f32 %v1177, %v1236
  %v1238 = vand.u32 %v1237, 4294901760
  %v1239 = vsub.f32 %v1237, %v1238
  %v1240 = vand.u32 %v1239, 4294901760
  %1241 = vmatpush.msra.mxu0 %v1240
  %v1242 = vand.u32 %v1169, 4294901760
  %v1243 = vsub.f32 %v1169, %v1242
  %v1244 = vand.u32 %v1243, 4294901760
  %v1245 = vsub.f32 %v1243, %v1244
  %v1246 = vand.u32 %v1245, 4294901760
  %1247 = vmatpush.msra.mxu0 %v1246
  %v1248 = vand.u32 %v1161, 4294901760
  %v1249 = vsub.f32 %v1161, %v1248
  %v1250 = vand.u32 %v1249, 4294901760
  %v1251 = vsub.f32 %v1249, %v1250
  %v1252 = vand.u32 %v1251, 4294901760
  %1253 = vmatpush.msra.mxu0 %v1252
  %v1254 = vand.u32 %v1153, 4294901760
  %v1255 = vsub.f32 %v1153, %v1254
  %v1256 = vand.u32 %v1255, 4294901760
  %v1257 = vsub.f32 %v1255, %v1256
  %v1258 = vand.u32 %v1257, 4294901760
  %1259 = vmatpush.msra.mxu0 %v1258
  %v1260 = vand.u32 %v1187, 4294901760
  %1261 = vmatmul.f32.gmra.mxu0 %v1260
  %v1262 = vpop.f32.mrf.mxu0
  %v1263 = vadd.f32 %v1217, %v1262
  %1264 = vdwg.mxu0
  %1265 = vmatpush.msra.mxu0 0.0
  %1266 = vmatpush.msra.mxu0 0.0
  %1267 = vmatpush.msra.mxu0 0.0
  %1268 = vmatpush.msra.mxu0 0.0
  %1269 = vmatpush.msra.mxu0 0.0
  %1270 = vmatpush.msra.mxu0 0.0
  %1271 = vmatpush.msra.mxu0 0.0
  %1272 = vmatpush.msra.mxu0 0.0
  %1273 = vmatpush.msra.mxu0 0.0
  %1274 = vmatpush.msra.mxu0 0.0
  %1275 = vmatpush.msra.mxu0 0.0
  %v1276 = vand.u32 %v1145, 4294901760
  %v1277 = vsub.f32 %v1145, %v1276
  %1278 = vmatpush.msra.mxu0 %v1277
  %v1279 = vand.u32 %v1177, 4294901760
  %v1280 = vsub.f32 %v1177, %v1279
  %1281 = vmatpush.msra.mxu0 %v1280
  %v1282 = vand.u32 %v1169, 4294901760
  %v1283 = vsub.f32 %v1169, %v1282
  %1284 = vmatpush.msra.mxu0 %v1283
  %v1285 = vand.u32 %v1161, 4294901760
  %v1286 = vsub.f32 %v1161, %v1285
  %1287 = vmatpush.msra.mxu0 %v1286
  %v1288 = vand.u32 %v1153, 4294901760
  %v1289 = vsub.f32 %v1153, %v1288
  %1290 = vmatpush.msra.mxu0 %v1289
  %v1291 = vand.u32 %v1187, 4294901760
  %v1292 = vsub.f32 %v1187, %v1291
  %1293 = vmatmul.f32.gmra.mxu0 %v1292
  %v1294 = vpop.f32.mrf.mxu0
  %v1295 = vadd.f32 %v1263, %v1294
  %1296 = vdwg.mxu0
  %1297 = vmatpush.msra.mxu0 0.0
  %1298 = vmatpush.msra.mxu0 0.0
  %1299 = vmatpush.msra.mxu0 0.0
  %1300 = vmatpush.msra.mxu0 0.0
  %1301 = vmatpush.msra.mxu0 0.0
  %1302 = vmatpush.msra.mxu0 0.0
  %1303 = vmatpush.msra.mxu0 0.0
  %1304 = vmatpush.msra.mxu0 0.0
  %1305 = vmatpush.msra.mxu0 0.0
  %1306 = vmatpush.msra.mxu0 0.0
  %1307 = vmatpush.msra.mxu0 0.0
  %v1308 = vand.u32 %v1145, 4294901760
  %1309 = vmatpush.msra.mxu0 %v1308
  %v1310 = vand.u32 %v1177, 4294901760
  %1311 = vmatpush.msra.mxu0 %v1310
  %v1312 = vand.u32 %v1169, 4294901760
  %1313 = vmatpush.msra.mxu0 %v1312
  %v1314 = vand.u32 %v1161, 4294901760
  %1315 = vmatpush.msra.mxu0 %v1314
  %v1316 = vand.u32 %v1153, 4294901760
  %1317 = vmatpush.msra.mxu0 %v1316
  %v1318 = vand.u32 %v1187, 4294901760
  %v1319 = vsub.f32 %v1187, %v1318
  %v1320 = vand.u32 %v1319, 4294901760
  %1321 = vmatmul.f32.gmra.mxu0 %v1320
  %v1322 = vpop.f32.mrf.mxu0
  %v1323 = vadd.f32 %v1295, %v1322
  %1324 = vdwg.mxu0
  %1325 = vmatpush.msra.mxu0 0.0
  %1326 = vmatpush.msra.mxu0 0.0
  %1327 = vmatpush.msra.mxu0 0.0
  %1328 = vmatpush.msra.mxu0 0.0
  %1329 = vmatpush.msra.mxu0 0.0
  %1330 = vmatpush.msra.mxu0 0.0
  %1331 = vmatpush.msra.mxu0 0.0
  %1332 = vmatpush.msra.mxu0 0.0
  %1333 = vmatpush.msra.mxu0 0.0
  %1334 = vmatpush.msra.mxu0 0.0
  %1335 = vmatpush.msra.mxu0 0.0
  %v1336 = vand.u32 %v1145, 4294901760
  %v1337 = vsub.f32 %v1145, %v1336
  %v1338 = vand.u32 %v1337, 4294901760
  %1339 = vmatpush.msra.mxu0 %v1338
  %v1340 = vand.u32 %v1177, 4294901760
  %v1341 = vsub.f32 %v1177, %v1340
  %v1342 = vand.u32 %v1341, 4294901760
  %1343 = vmatpush.msra.mxu0 %v1342
  %v1344 = vand.u32 %v1169, 4294901760
  %v1345 = vsub.f32 %v1169, %v1344
  %v1346 = vand.u32 %v1345, 4294901760
  %1347 = vmatpush.msra.mxu0 %v1346
  %v1348 = vand.u32 %v1161, 4294901760
  %v1349 = vsub.f32 %v1161, %v1348
  %v1350 = vand.u32 %v1349, 4294901760
  %1351 = vmatpush.msra.mxu0 %v1350
  %v1352 = vand.u32 %v1153, 4294901760
  %v1353 = vsub.f32 %v1153, %v1352
  %v1354 = vand.u32 %v1353, 4294901760
  %1355 = vmatpush.msra.mxu0 %v1354
  %v1356 = vand.u32 %v1187, 4294901760
  %1357 = vmatmul.f32.gmra.mxu0 %v1356
  %v1358 = vpop.f32.mrf.mxu0
  %v1359 = vadd.f32 %v1323, %v1358
  %1360 = vdwg.mxu0
  %1361 = vmatpush.msra.mxu0 0.0
  %1362 = vmatpush.msra.mxu0 0.0
  %1363 = vmatpush.msra.mxu0 0.0
  %1364 = vmatpush.msra.mxu0 0.0
  %1365 = vmatpush.msra.mxu0 0.0
  %1366 = vmatpush.msra.mxu0 0.0
  %1367 = vmatpush.msra.mxu0 0.0
  %1368 = vmatpush.msra.mxu0 0.0
  %1369 = vmatpush.msra.mxu0 0.0
  %1370 = vmatpush.msra.mxu0 0.0
  %1371 = vmatpush.msra.mxu0 0.0
  %v1372 = vand.u32 %v1145, 4294901760
  %1373 = vmatpush.msra.mxu0 %v1372
  %v1374 = vand.u32 %v1177, 4294901760
  %1375 = vmatpush.msra.mxu0 %v1374
  %v1376 = vand.u32 %v1169, 4294901760
  %1377 = vmatpush.msra.mxu0 %v1376
  %v1378 = vand.u32 %v1161, 4294901760
  %1379 = vmatpush.msra.mxu0 %v1378
  %v1380 = vand.u32 %v1153, 4294901760
  %1381 = vmatpush.msra.mxu0 %v1380
  %v1382 = vand.u32 %v1187, 4294901760
  %1383 = vmatmul.f32.gmra.mxu0 %v1382
  %v1384 = vpop.f32.mrf.mxu0
  %v1385 = vadd.f32 %v1359, %v1384
  %1386 = vdwg.mxu0
  %1387 = vmatpush.msra.mxu0 0.0
  %1388 = vmatpush.msra.mxu0 0.0
  %1389 = vmatpush.msra.mxu0 0.0
  %1390 = vmatpush.msra.mxu0 0.0
  %1391 = vmatpush.msra.mxu0 0.0
  %1392 = vmatpush.msra.mxu0 0.0
  %1393 = vmatpush.msra.mxu0 0.0
  %1394 = vmatpush.msra.mxu0 0.0
  %1395 = vmatpush.msra.mxu0 0.0
  %1396 = vmatpush.msra.mxu0 0.0
  %1397 = vmatpush.msra.mxu0 0.0
  %v1398 = vand.u32 %v1146, 4294901760
  %1399 = vmatpush.msra.mxu0 %v1398
  %v1400 = vand.u32 %v1178, 4294901760
  %1401 = vmatpush.msra.mxu0 %v1400
  %v1402 = vand.u32 %v1170, 4294901760
  %1403 = vmatpush.msra.mxu0 %v1402
  %v1404 = vand.u32 %v1162, 4294901760
  %1405 = vmatpush.msra.mxu0 %v1404
  %v1406 = vand.u32 %v1154, 4294901760
  %1407 = vmatpush.msra.mxu0 %v1406
  %v1408 = vand.u32 %v1187, 4294901760
  %v1409 = vsub.f32 %v1187, %v1408
  %v1410 = vand.u32 %v1409, 4294901760
  %v1411 = vsub.f32 %v1409, %v1410
  %v1412 = vand.u32 %v1411, 4294901760
  %1413 = vmatmul.f32.gmra.mxu0 %v1412
  %v1414 = vpop.f32.mrf.mxu0
  %v1415 = vadd.f32 %v1184, %v1414
  %1416 = vdwg.mxu0
  %1417 = vmatpush.msra.mxu0 0.0
  %1418 = vmatpush.msra.mxu0 0.0
  %1419 = vmatpush.msra.mxu0 0.0
  %1420 = vmatpush.msra.mxu0 0.0
  %1421 = vmatpush.msra.mxu0 0.0
  %1422 = vmatpush.msra.mxu0 0.0
  %1423 = vmatpush.msra.mxu0 0.0
  %1424 = vmatpush.msra.mxu0 0.0
  %1425 = vmatpush.msra.mxu0 0.0
  %1426 = vmatpush.msra.mxu0 0.0
  %1427 = vmatpush.msra.mxu0 0.0
  %v1428 = vand.u32 %v1146, 4294901760
  %v1429 = vsub.f32 %v1146, %v1428
  %v1430 = vand.u32 %v1429, 4294901760
  %v1431 = vsub.f32 %v1429, %v1430
  %v1432 = vand.u32 %v1431, 4294901760
  %1433 = vmatpush.msra.mxu0 %v1432
  %v1434 = vand.u32 %v1178, 4294901760
  %v1435 = vsub.f32 %v1178, %v1434
  %v1436 = vand.u32 %v1435, 4294901760
  %v1437 = vsub.f32 %v1435, %v1436
  %v1438 = vand.u32 %v1437, 4294901760
  %1439 = vmatpush.msra.mxu0 %v1438
  %v1440 = vand.u32 %v1170, 4294901760
  %v1441 = vsub.f32 %v1170, %v1440
  %v1442 = vand.u32 %v1441, 4294901760
  %v1443 = vsub.f32 %v1441, %v1442
  %v1444 = vand.u32 %v1443, 4294901760
  %1445 = vmatpush.msra.mxu0 %v1444
  %v1446 = vand.u32 %v1162, 4294901760
  %v1447 = vsub.f32 %v1162, %v1446
  %v1448 = vand.u32 %v1447, 4294901760
  %v1449 = vsub.f32 %v1447, %v1448
  %v1450 = vand.u32 %v1449, 4294901760
  %1451 = vmatpush.msra.mxu0 %v1450
  %v1452 = vand.u32 %v1154, 4294901760
  %v1453 = vsub.f32 %v1154, %v1452
  %v1454 = vand.u32 %v1453, 4294901760
  %v1455 = vsub.f32 %v1453, %v1454
  %v1456 = vand.u32 %v1455, 4294901760
  %1457 = vmatpush.msra.mxu0 %v1456
  %v1458 = vand.u32 %v1187, 4294901760
  %1459 = vmatmul.f32.gmra.mxu0 %v1458
  %v1460 = vpop.f32.mrf.mxu0
  %v1461 = vadd.f32 %v1415, %v1460
  %1462 = vdwg.mxu0
  %1463 = vmatpush.msra.mxu0 0.0
  %1464 = vmatpush.msra.mxu0 0.0
  %1465 = vmatpush.msra.mxu0 0.0
  %1466 = vmatpush.msra.mxu0 0.0
  %1467 = vmatpush.msra.mxu0 0.0
  %1468 = vmatpush.msra.mxu0 0.0
  %1469 = vmatpush.msra.mxu0 0.0
  %1470 = vmatpush.msra.mxu0 0.0
  %1471 = vmatpush.msra.mxu0 0.0
  %1472 = vmatpush.msra.mxu0 0.0
  %1473 = vmatpush.msra.mxu0 0.0
  %v1474 = vand.u32 %v1146, 4294901760
  %v1475 = vsub.f32 %v1146, %v1474
  %1476 = vmatpush.msra.mxu0 %v1475
  %v1477 = vand.u32 %v1178, 4294901760
  %v1478 = vsub.f32 %v1178, %v1477
  %1479 = vmatpush.msra.mxu0 %v1478
  %v1480 = vand.u32 %v1170, 4294901760
  %v1481 = vsub.f32 %v1170, %v1480
  %1482 = vmatpush.msra.mxu0 %v1481
  %v1483 = vand.u32 %v1162, 4294901760
  %v1484 = vsub.f32 %v1162, %v1483
  %1485 = vmatpush.msra.mxu0 %v1484
  %v1486 = vand.u32 %v1154, 4294901760
  %v1487 = vsub.f32 %v1154, %v1486
  %1488 = vmatpush.msra.mxu0 %v1487
  %v1489 = vand.u32 %v1187, 4294901760
  %v1490 = vsub.f32 %v1187, %v1489
  %1491 = vmatmul.f32.gmra.mxu0 %v1490
  %v1492 = vpop.f32.mrf.mxu0
  %v1493 = vadd.f32 %v1461, %v1492
  %1494 = vdwg.mxu0
  %1495 = vmatpush.msra.mxu0 0.0
  %1496 = vmatpush.msra.mxu0 0.0
  %1497 = vmatpush.msra.mxu0 0.0
  %1498 = vmatpush.msra.mxu0 0.0
  %1499 = vmatpush.msra.mxu0 0.0
  %1500 = vmatpush.msra.mxu0 0.0
  %1501 = vmatpush.msra.mxu0 0.0
  %1502 = vmatpush.msra.mxu0 0.0
  %1503 = vmatpush.msra.mxu0 0.0
  %1504 = vmatpush.msra.mxu0 0.0
  %1505 = vmatpush.msra.mxu0 0.0
  %v1506 = vand.u32 %v1146, 4294901760
  %1507 = vmatpush.msra.mxu0 %v1506
  %v1508 = vand.u32 %v1178, 4294901760
  %1509 = vmatpush.msra.mxu0 %v1508
  %v1510 = vand.u32 %v1170, 4294901760
  %1511 = vmatpush.msra.mxu0 %v1510
  %v1512 = vand.u32 %v1162, 4294901760
  %1513 = vmatpush.msra.mxu0 %v1512
  %v1514 = vand.u32 %v1154, 4294901760
  %1515 = vmatpush.msra.mxu0 %v1514
  %v1516 = vand.u32 %v1187, 4294901760
  %v1517 = vsub.f32 %v1187, %v1516
  %v1518 = vand.u32 %v1517, 4294901760
  %1519 = vmatmul.f32.gmra.mxu0 %v1518
  %v1520 = vpop.f32.mrf.mxu0
  %v1521 = vadd.f32 %v1493, %v1520
  %1522 = vdwg.mxu0
  %1523 = vmatpush.msra.mxu0 0.0
  %1524 = vmatpush.msra.mxu0 0.0
  %1525 = vmatpush.msra.mxu0 0.0
  %1526 = vmatpush.msra.mxu0 0.0
  %1527 = vmatpush.msra.mxu0 0.0
  %1528 = vmatpush.msra.mxu0 0.0
  %1529 = vmatpush.msra.mxu0 0.0
  %1530 = vmatpush.msra.mxu0 0.0
  %1531 = vmatpush.msra.mxu0 0.0
  %1532 = vmatpush.msra.mxu0 0.0
  %1533 = vmatpush.msra.mxu0 0.0
  %v1534 = vand.u32 %v1146, 4294901760
  %v1535 = vsub.f32 %v1146, %v1534
  %v1536 = vand.u32 %v1535, 4294901760
  %1537 = vmatpush.msra.mxu0 %v1536
  %v1538 = vand.u32 %v1178, 4294901760
  %v1539 = vsub.f32 %v1178, %v1538
  %v1540 = vand.u32 %v1539, 4294901760
  %1541 = vmatpush.msra.mxu0 %v1540
  %v1542 = vand.u32 %v1170, 4294901760
  %v1543 = vsub.f32 %v1170, %v1542
  %v1544 = vand.u32 %v1543, 4294901760
  %1545 = vmatpush.msra.mxu0 %v1544
  %v1546 = vand.u32 %v1162, 4294901760
  %v1547 = vsub.f32 %v1162, %v1546
  %v1548 = vand.u32 %v1547, 4294901760
  %1549 = vmatpush.msra.mxu0 %v1548
  %v1550 = vand.u32 %v1154, 4294901760
  %v1551 = vsub.f32 %v1154, %v1550
  %v1552 = vand.u32 %v1551, 4294901760
  %1553 = vmatpush.msra.mxu0 %v1552
  %v1554 = vand.u32 %v1187, 4294901760
  %1555 = vmatmul.f32.gmra.mxu0 %v1554
  %v1556 = vpop.f32.mrf.mxu0
  %v1557 = vadd.f32 %v1521, %v1556
  %1558 = vdwg.mxu0
  %1559 = vmatpush.msra.mxu0 0.0
  %1560 = vmatpush.msra.mxu0 0.0
  %1561 = vmatpush.msra.mxu0 0.0
  %1562 = vmatpush.msra.mxu0 0.0
  %1563 = vmatpush.msra.mxu0 0.0
  %1564 = vmatpush.msra.mxu0 0.0
  %1565 = vmatpush.msra.mxu0 0.0
  %1566 = vmatpush.msra.mxu0 0.0
  %1567 = vmatpush.msra.mxu0 0.0
  %1568 = vmatpush.msra.mxu0 0.0
  %1569 = vmatpush.msra.mxu0 0.0
  %v1570 = vand.u32 %v1146, 4294901760
  %1571 = vmatpush.msra.mxu0 %v1570
  %v1572 = vand.u32 %v1178, 4294901760
  %1573 = vmatpush.msra.mxu0 %v1572
  %v1574 = vand.u32 %v1170, 4294901760
  %1575 = vmatpush.msra.mxu0 %v1574
  %v1576 = vand.u32 %v1162, 4294901760
  %1577 = vmatpush.msra.mxu0 %v1576
  %v1578 = vand.u32 %v1154, 4294901760
  %1579 = vmatpush.msra.mxu0 %v1578
  %v1580 = vand.u32 %v1187, 4294901760
  %1581 = vmatmul.f32.gmra.mxu0 %v1580
  %v1582 = vpop.f32.mrf.mxu0
  %v1583 = vadd.f32 %v1557, %v1582
  %1584 = vdwg.mxu0
  %1585 = vmatpush.msra.mxu0 0.0
  %1586 = vmatpush.msra.mxu0 0.0
  %1587 = vmatpush.msra.mxu0 0.0
  %1588 = vmatpush.msra.mxu0 0.0
  %1589 = vmatpush.msra.mxu0 0.0
  %1590 = vmatpush.msra.mxu0 0.0
  %1591 = vmatpush.msra.mxu0 0.0
  %1592 = vmatpush.msra.mxu0 0.0
  %1593 = vmatpush.msra.mxu0 0.0
  %1594 = vmatpush.msra.mxu0 0.0
  %1595 = vmatpush.msra.mxu0 0.0
  %1596 = vmatpush.msra.mxu0 0.0
  %1597 = vmatpush.msra.mxu0 0.0
  %1598 = vmatpush.msra.mxu0 0.0
  %1599 = vmatpush.msra.mxu0 0.0
  %v1600 = vand.u32 %v1385, 4294901760
  %1601 = vmatpush.msra.mxu0 %v1600
  %v1602 = vand.u32 %v515, 4294901760
  %v1603 = vsub.f32 %v515, %v1602
  %v1604 = vand.u32 %v1603, 4294901760
  %v1605 = vsub.f32 %v1603, %v1604
  %v1606 = vand.u32 %v1605, 4294901760
  %1607 = vmatmul.f32.gmra.mxu0 %v1606
  %v1608 = vpop.f32.mrf.mxu0
  %v1609 = vadd.f32 0.0, %v1608
  %1610 = vdwg.mxu0
  %1611 = vmatpush.msra.mxu0 0.0
  %1612 = vmatpush.msra.mxu0 0.0
  %1613 = vmatpush.msra.mxu0 0.0
  %1614 = vmatpush.msra.mxu0 0.0
  %1615 = vmatpush.msra.mxu0 0.0
  %1616 = vmatpush.msra.mxu0 0.0
  %1617 = vmatpush.msra.mxu0 0.0
  %1618 = vmatpush.msra.mxu0 0.0
  %1619 = vmatpush.msra.mxu0 0.0
  %1620 = vmatpush.msra.mxu0 0.0
  %1621 = vmatpush.msra.mxu0 0.0
  %1622 = vmatpush.msra.mxu0 0.0
  %1623 = vmatpush.msra.mxu0 0.0
  %1624 = vmatpush.msra.mxu0 0.0
  %1625 = vmatpush.msra.mxu0 0.0
  %v1626 = vand.u32 %v1385, 4294901760
  %v1627 = vsub.f32 %v1385, %v1626
  %v1628 = vand.u32 %v1627, 4294901760
  %v1629 = vsub.f32 %v1627, %v1628
  %v1630 = vand.u32 %v1629, 4294901760
  %1631 = vmatpush.msra.mxu0 %v1630
  %v1632 = vand.u32 %v515, 4294901760
  %1633 = vmatmul.f32.gmra.mxu0 %v1632
  %v1634 = vpop.f32.mrf.mxu0
  %v1635 = vadd.f32 %v1609, %v1634
  %1636 = vdwg.mxu0
  %1637 = vmatpush.msra.mxu0 0.0
  %1638 = vmatpush.msra.mxu0 0.0
  %1639 = vmatpush.msra.mxu0 0.0
  %1640 = vmatpush.msra.mxu0 0.0
  %1641 = vmatpush.msra.mxu0 0.0
  %1642 = vmatpush.msra.mxu0 0.0
  %1643 = vmatpush.msra.mxu0 0.0
  %1644 = vmatpush.msra.mxu0 0.0
  %1645 = vmatpush.msra.mxu0 0.0
  %1646 = vmatpush.msra.mxu0 0.0
  %1647 = vmatpush.msra.mxu0 0.0
  %1648 = vmatpush.msra.mxu0 0.0
  %1649 = vmatpush.msra.mxu0 0.0
  %1650 = vmatpush.msra.mxu0 0.0
  %1651 = vmatpush.msra.mxu0 0.0
  %v1652 = vand.u32 %v1385, 4294901760
  %v1653 = vsub.f32 %v1385, %v1652
  %1654 = vmatpush.msra.mxu0 %v1653
  %v1655 = vand.u32 %v515, 4294901760
  %v1656 = vsub.f32 %v515, %v1655
  %1657 = vmatmul.f32.gmra.mxu0 %v1656
  %v1658 = vpop.f32.mrf.mxu0
  %v1659 = vadd.f32 %v1635, %v1658
  %1660 = vdwg.mxu0
  %1661 = vmatpush.msra.mxu0 0.0
  %1662 = vmatpush.msra.mxu0 0.0
  %1663 = vmatpush.msra.mxu0 0.0
  %1664 = vmatpush.msra.mxu0 0.0
  %1665 = vmatpush.msra.mxu0 0.0
  %1666 = vmatpush.msra.mxu0 0.0
  %1667 = vmatpush.msra.mxu0 0.0
  %1668 = vmatpush.msra.mxu0 0.0
  %1669 = vmatpush.msra.mxu0 0.0
  %1670 = vmatpush.msra.mxu0 0.0
  %1671 = vmatpush.msra.mxu0 0.0
  %1672 = vmatpush.msra.mxu0 0.0
  %1673 = vmatpush.msra.mxu0 0.0
  %1674 = vmatpush.msra.mxu0 0.0
  %1675 = vmatpush.msra.mxu0 0.0
  %v1676 = vand.u32 %v1385, 4294901760
  %1677 = vmatpush.msra.mxu0 %v1676
  %v1678 = vand.u32 %v515, 4294901760
  %v1679 = vsub.f32 %v515, %v1678
  %v1680 = vand.u32 %v1679, 4294901760
  %1681 = vmatmul.f32.gmra.mxu0 %v1680
  %v1682 = vpop.f32.mrf.mxu0
  %v1683 = vadd.f32 %v1659, %v1682
  %1684 = vdwg.mxu0
  %1685 = vmatpush.msra.mxu0 0.0
  %1686 = vmatpush.msra.mxu0 0.0
  %1687 = vmatpush.msra.mxu0 0.0
  %1688 = vmatpush.msra.mxu0 0.0
  %1689 = vmatpush.msra.mxu0 0.0
  %1690 = vmatpush.msra.mxu0 0.0
  %1691 = vmatpush.msra.mxu0 0.0
  %1692 = vmatpush.msra.mxu0 0.0
  %1693 = vmatpush.msra.mxu0 0.0
  %1694 = vmatpush.msra.mxu0 0.0
  %1695 = vmatpush.msra.mxu0 0.0
  %1696 = vmatpush.msra.mxu0 0.0
  %1697 = vmatpush.msra.mxu0 0.0
  %1698 = vmatpush.msra.mxu0 0.0
  %1699 = vmatpush.msra.mxu0 0.0
  %v1700 = vand.u32 %v1385, 4294901760
  %v1701 = vsub.f32 %v1385, %v1700
  %v1702 = vand.u32 %v1701, 4294901760
  %1703 = vmatpush.msra.mxu0 %v1702
  %v1704 = vand.u32 %v515, 4294901760
  %1705 = vmatmul.f32.gmra.mxu0 %v1704
  %v1706 = vpop.f32.mrf.mxu0
  %v1707 = vadd.f32 %v1683, %v1706
  %1708 = vdwg.mxu0
  %1709 = vmatpush.msra.mxu0 0.0
  %1710 = vmatpush.msra.mxu0 0.0
  %1711 = vmatpush.msra.mxu0 0.0
  %1712 = vmatpush.msra.mxu0 0.0
  %1713 = vmatpush.msra.mxu0 0.0
  %1714 = vmatpush.msra.mxu0 0.0
  %1715 = vmatpush.msra.mxu0 0.0
  %1716 = vmatpush.msra.mxu0 0.0
  %1717 = vmatpush.msra.mxu0 0.0
  %1718 = vmatpush.msra.mxu0 0.0
  %1719 = vmatpush.msra.mxu0 0.0
  %1720 = vmatpush.msra.mxu0 0.0
  %1721 = vmatpush.msra.mxu0 0.0
  %1722 = vmatpush.msra.mxu0 0.0
  %1723 = vmatpush.msra.mxu0 0.0
  %v1724 = vand.u32 %v1385, 4294901760
  %1725 = vmatpush.msra.mxu0 %v1724
  %v1726 = vand.u32 %v515, 4294901760
  %1727 = vmatmul.f32.gmra.mxu0 %v1726
  %v1728 = vpop.f32.mrf.mxu0
  %v1729 = vadd.f32 %v1707, %v1728
  %1730 = vdwg.mxu0
  %1731 = vmatpush.msra.mxu0 0.0
  %1732 = vmatpush.msra.mxu0 0.0
  %1733 = vmatpush.msra.mxu0 0.0
  %1734 = vmatpush.msra.mxu0 0.0
  %1735 = vmatpush.msra.mxu0 0.0
  %1736 = vmatpush.msra.mxu0 0.0
  %1737 = vmatpush.msra.mxu0 0.0
  %1738 = vmatpush.msra.mxu0 0.0
  %1739 = vmatpush.msra.mxu0 0.0
  %1740 = vmatpush.msra.mxu0 0.0
  %1741 = vmatpush.msra.mxu0 0.0
  %1742 = vmatpush.msra.mxu0 0.0
  %1743 = vmatpush.msra.mxu0 0.0
  %1744 = vmatpush.msra.mxu0 0.0
  %1745 = vmatpush.msra.mxu0 0.0
  %v1746 = vand.u32 %v1583, 4294901760
  %1747 = vmatpush.msra.mxu0 %v1746
  %v1748 = vand.u32 %v515, 4294901760
  %v1749 = vsub.f32 %v515, %v1748
  %v1750 = vand.u32 %v1749, 4294901760
  %v1751 = vsub.f32 %v1749, %v1750
  %v1752 = vand.u32 %v1751, 4294901760
  %1753 = vmatmul.f32.gmra.mxu0 %v1752
  %v1754 = vpop.f32.mrf.mxu0
  %v1755 = vadd.f32 0.0, %v1754
  %1756 = vdwg.mxu0
  %1757 = vmatpush.msra.mxu0 0.0
  %1758 = vmatpush.msra.mxu0 0.0
  %1759 = vmatpush.msra.mxu0 0.0
  %1760 = vmatpush.msra.mxu0 0.0
  %1761 = vmatpush.msra.mxu0 0.0
  %1762 = vmatpush.msra.mxu0 0.0
  %1763 = vmatpush.msra.mxu0 0.0
  %1764 = vmatpush.msra.mxu0 0.0
  %1765 = vmatpush.msra.mxu0 0.0
  %1766 = vmatpush.msra.mxu0 0.0
  %1767 = vmatpush.msra.mxu0 0.0
  %1768 = vmatpush.msra.mxu0 0.0
  %1769 = vmatpush.msra.mxu0 0.0
  %1770 = vmatpush.msra.mxu0 0.0
  %1771 = vmatpush.msra.mxu0 0.0
  %v1772 = vand.u32 %v1583, 4294901760
  %v1773 = vsub.f32 %v1583, %v1772
  %v1774 = vand.u32 %v1773, 4294901760
  %v1775 = vsub.f32 %v1773, %v1774
  %v1776 = vand.u32 %v1775, 4294901760
  %1777 = vmatpush.msra.mxu0 %v1776
  %v1778 = vand.u32 %v515, 4294901760
  %1779 = vmatmul.f32.gmra.mxu0 %v1778
  %v1780 = vpop.f32.mrf.mxu0
  %v1781 = vadd.f32 %v1755, %v1780
  %1782 = vdwg.mxu0
  %1783 = vmatpush.msra.mxu0 0.0
  %1784 = vmatpush.msra.mxu0 0.0
  %1785 = vmatpush.msra.mxu0 0.0
  %1786 = vmatpush.msra.mxu0 0.0
  %1787 = vmatpush.msra.mxu0 0.0
  %1788 = vmatpush.msra.mxu0 0.0
  %1789 = vmatpush.msra.mxu0 0.0
  %1790 = vmatpush.msra.mxu0 0.0
  %1791 = vmatpush.msra.mxu0 0.0
  %1792 = vmatpush.msra.mxu0 0.0
  %1793 = vmatpush.msra.mxu0 0.0
  %1794 = vmatpush.msra.mxu0 0.0
  %1795 = vmatpush.msra.mxu0 0.0
  %1796 = vmatpush.msra.mxu0 0.0
  %1797 = vmatpush.msra.mxu0 0.0
  %v1798 = vand.u32 %v1583, 4294901760
  %v1799 = vsub.f32 %v1583, %v1798
  %1800 = vmatpush.msra.mxu0 %v1799
  %v1801 = vand.u32 %v515, 4294901760
  %v1802 = vsub.f32 %v515, %v1801
  %1803 = vmatmul.f32.gmra.mxu0 %v1802
  %v1804 = vpop.f32.mrf.mxu0
  %v1805 = vadd.f32 %v1781, %v1804
  %1806 = vdwg.mxu0
  %1807 = vmatpush.msra.mxu0 0.0
  %1808 = vmatpush.msra.mxu0 0.0
  %1809 = vmatpush.msra.mxu0 0.0
  %1810 = vmatpush.msra.mxu0 0.0
  %1811 = vmatpush.msra.mxu0 0.0
  %1812 = vmatpush.msra.mxu0 0.0
  %1813 = vmatpush.msra.mxu0 0.0
  %1814 = vmatpush.msra.mxu0 0.0
  %1815 = vmatpush.msra.mxu0 0.0
  %1816 = vmatpush.msra.mxu0 0.0
  %1817 = vmatpush.msra.mxu0 0.0
  %1818 = vmatpush.msra.mxu0 0.0
  %1819 = vmatpush.msra.mxu0 0.0
  %1820 = vmatpush.msra.mxu0 0.0
  %1821 = vmatpush.msra.mxu0 0.0
  %v1822 = vand.u32 %v1583, 4294901760
  %1823 = vmatpush.msra.mxu0 %v1822
  %v1824 = vand.u32 %v515, 4294901760
  %v1825 = vsub.f32 %v515, %v1824
  %v1826 = vand.u32 %v1825, 4294901760
  %1827 = vmatmul.f32.gmra.mxu0 %v1826
  %v1828 = vpop.f32.mrf.mxu0
  %v1829 = vadd.f32 %v1805, %v1828
  %1830 = vdwg.mxu0
  %1831 = vmatpush.msra.mxu0 0.0
  %1832 = vmatpush.msra.mxu0 0.0
  %1833 = vmatpush.msra.mxu0 0.0
  %1834 = vmatpush.msra.mxu0 0.0
  %1835 = vmatpush.msra.mxu0 0.0
  %1836 = vmatpush.msra.mxu0 0.0
  %1837 = vmatpush.msra.mxu0 0.0
  %1838 = vmatpush.msra.mxu0 0.0
  %1839 = vmatpush.msra.mxu0 0.0
  %1840 = vmatpush.msra.mxu0 0.0
  %1841 = vmatpush.msra.mxu0 0.0
  %1842 = vmatpush.msra.mxu0 0.0
  %1843 = vmatpush.msra.mxu0 0.0
  %1844 = vmatpush.msra.mxu0 0.0
  %1845 = vmatpush.msra.mxu0 0.0
  %v1846 = vand.u32 %v1583, 4294901760
  %v1847 = vsub.f32 %v1583, %v1846
  %v1848 = vand.u32 %v1847, 4294901760
  %1849 = vmatpush.msra.mxu0 %v1848
  %v1850 = vand.u32 %v515, 4294901760
  %1851 = vmatmul.f32.gmra.mxu0 %v1850
  %v1852 = vpop.f32.mrf.mxu0
  %v1853 = vadd.f32 %v1829, %v1852
  %1854 = vdwg.mxu0
  %1855 = vmatpush.msra.mxu0 0.0
  %1856 = vmatpush.msra.mxu0 0.0
  %1857 = vmatpush.msra.mxu0 0.0
  %1858 = vmatpush.msra.mxu0 0.0
  %1859 = vmatpush.msra.mxu0 0.0
  %1860 = vmatpush.msra.mxu0 0.0
  %1861 = vmatpush.msra.mxu0 0.0
  %1862 = vmatpush.msra.mxu0 0.0
  %1863 = vmatpush.msra.mxu0 0.0
  %1864 = vmatpush.msra.mxu0 0.0
  %1865 = vmatpush.msra.mxu0 0.0
  %1866 = vmatpush.msra.mxu0 0.0
  %1867 = vmatpush.msra.mxu0 0.0
  %1868 = vmatpush.msra.mxu0 0.0
  %1869 = vmatpush.msra.mxu0 0.0
  %v1870 = vand.u32 %v1583, 4294901760
  %1871 = vmatpush.msra.mxu0 %v1870
  %v1872 = vand.u32 %v515, 4294901760
  %1873 = vmatmul.f32.gmra.mxu0 %v1872
  %v1874 = vpop.f32.mrf.mxu0
  %v1875 = vadd.f32 %v1853, %v1874
  %1876 = vdwg.mxu0
  %v1877 = vmul.f32 %v1385, %v1385
  %v1878 = vmul.f32 %v1583, %v1583
  %1879 = vmatpush.msra.mxu0 0.0
  %1880 = vmatpush.msra.mxu0 0.0
  %1881 = vmatpush.msra.mxu0 0.0
  %1882 = vmatpush.msra.mxu0 0.0
  %1883 = vmatpush.msra.mxu0 0.0
  %1884 = vmatpush.msra.mxu0 0.0
  %1885 = vmatpush.msra.mxu0 0.0
  %1886 = vmatpush.msra.mxu0 0.0
  %1887 = vmatpush.msra.mxu0 0.0
  %1888 = vmatpush.msra.mxu0 0.0
  %1889 = vmatpush.msra.mxu0 0.0
  %1890 = vmatpush.msra.mxu0 0.0
  %1891 = vmatpush.msra.mxu0 0.0
  %1892 = vmatpush.msra.mxu0 0.0
  %1893 = vmatpush.msra.mxu0 0.0
  %v1894 = vand.u32 %v1877, 4294901760
  %1895 = vmatpush.msra.mxu0 %v1894
  %v1896 = vand.u32 %v515, 4294901760
  %v1897 = vsub.f32 %v515, %v1896
  %v1898 = vand.u32 %v1897, 4294901760
  %v1899 = vsub.f32 %v1897, %v1898
  %v1900 = vand.u32 %v1899, 4294901760
  %1901 = vmatmul.f32.gmra.mxu0 %v1900
  %v1902 = vpop.f32.mrf.mxu0
  %v1903 = vadd.f32 0.0, %v1902
  %1904 = vdwg.mxu0
  %1905 = vmatpush.msra.mxu0 0.0
  %1906 = vmatpush.msra.mxu0 0.0
  %1907 = vmatpush.msra.mxu0 0.0
  %1908 = vmatpush.msra.mxu0 0.0
  %1909 = vmatpush.msra.mxu0 0.0
  %1910 = vmatpush.msra.mxu0 0.0
  %1911 = vmatpush.msra.mxu0 0.0
  %1912 = vmatpush.msra.mxu0 0.0
  %1913 = vmatpush.msra.mxu0 0.0
  %1914 = vmatpush.msra.mxu0 0.0
  %1915 = vmatpush.msra.mxu0 0.0
  %1916 = vmatpush.msra.mxu0 0.0
  %1917 = vmatpush.msra.mxu0 0.0
  %1918 = vmatpush.msra.mxu0 0.0
  %1919 = vmatpush.msra.mxu0 0.0
  %v1920 = vand.u32 %v1877, 4294901760
  %v1921 = vsub.f32 %v1877, %v1920
  %v1922 = vand.u32 %v1921, 4294901760
  %v1923 = vsub.f32 %v1921, %v1922
  %v1924 = vand.u32 %v1923, 4294901760
  %1925 = vmatpush.msra.mxu0 %v1924
  %v1926 = vand.u32 %v515, 4294901760
  %1927 = vmatmul.f32.gmra.mxu0 %v1926
  %v1928 = vpop.f32.mrf.mxu0
  %v1929 = vadd.f32 %v1903, %v1928
  %1930 = vdwg.mxu0
  %1931 = vmatpush.msra.mxu0 0.0
  %1932 = vmatpush.msra.mxu0 0.0
  %1933 = vmatpush.msra.mxu0 0.0
  %1934 = vmatpush.msra.mxu0 0.0
  %1935 = vmatpush.msra.mxu0 0.0
  %1936 = vmatpush.msra.mxu0 0.0
  %1937 = vmatpush.msra.mxu0 0.0
  %1938 = vmatpush.msra.mxu0 0.0
  %1939 = vmatpush.msra.mxu0 0.0
  %1940 = vmatpush.msra.mxu0 0.0
  %1941 = vmatpush.msra.mxu0 0.0
  %1942 = vmatpush.msra.mxu0 0.0
  %1943 = vmatpush.msra.mxu0 0.0
  %1944 = vmatpush.msra.mxu0 0.0
  %1945 = vmatpush.msra.mxu0 0.0
  %v1946 = vand.u32 %v1877, 4294901760
  %v1947 = vsub.f32 %v1877, %v1946
  %1948 = vmatpush.msra.mxu0 %v1947
  %v1949 = vand.u32 %v515, 4294901760
  %v1950 = vsub.f32 %v515, %v1949
  %1951 = vmatmul.f32.gmra.mxu0 %v1950
  %v1952 = vpop.f32.mrf.mxu0
  %v1953 = vadd.f32 %v1929, %v1952
  %1954 = vdwg.mxu0
  %1955 = vmatpush.msra.mxu0 0.0
  %1956 = vmatpush.msra.mxu0 0.0
  %1957 = vmatpush.msra.mxu0 0.0
  %1958 = vmatpush.msra.mxu0 0.0
  %1959 = vmatpush.msra.mxu0 0.0
  %1960 = vmatpush.msra.mxu0 0.0
  %1961 = vmatpush.msra.mxu0 0.0
  %1962 = vmatpush.msra.mxu0 0.0
  %1963 = vmatpush.msra.mxu0 0.0
  %1964 = vmatpush.msra.mxu0 0.0
  %1965 = vmatpush.msra.mxu0 0.0
  %1966 = vmatpush.msra.mxu0 0.0
  %1967 = vmatpush.msra.mxu0 0.0
  %1968 = vmatpush.msra.mxu0 0.0
  %1969 = vmatpush.msra.mxu0 0.0
  %v1970 = vand.u32 %v1877, 4294901760
  %1971 = vmatpush.msra.mxu0 %v1970
  %v1972 = vand.u32 %v515, 4294901760
  %v1973 = vsub.f32 %v515, %v1972
  %v1974 = vand.u32 %v1973, 4294901760
  %1975 = vmatmul.f32.gmra.mxu0 %v1974
  %v1976 = vpop.f32.mrf.mxu0
  %v1977 = vadd.f32 %v1953, %v1976
  %1978 = vdwg.mxu0
  %1979 = vmatpush.msra.mxu0 0.0
  %1980 = vmatpush.msra.mxu0 0.0
  %1981 = vmatpush.msra.mxu0 0.0
  %1982 = vmatpush.msra.mxu0 0.0
  %1983 = vmatpush.msra.mxu0 0.0
  %1984 = vmatpush.msra.mxu0 0.0
  %1985 = vmatpush.msra.mxu0 0.0
  %1986 = vmatpush.msra.mxu0 0.0
  %1987 = vmatpush.msra.mxu0 0.0
  %1988 = vmatpush.msra.mxu0 0.0
  %1989 = vmatpush.msra.mxu0 0.0
  %1990 = vmatpush.msra.mxu0 0.0
  %1991 = vmatpush.msra.mxu0 0.0
  %1992 = vmatpush.msra.mxu0 0.0
  %1993 = vmatpush.msra.mxu0 0.0
  %v1994 = vand.u32 %v1877, 4294901760
  %v1995 = vsub.f32 %v1877, %v1994
  %v1996 = vand.u32 %v1995, 4294901760
  %1997 = vmatpush.msra.mxu0 %v1996
  %v1998 = vand.u32 %v515, 4294901760
  %1999 = vmatmul.f32.gmra.mxu0 %v1998
  %v2000 = vpop.f32.mrf.mxu0
  %v2001 = vadd.f32 %v1977, %v2000
  %2002 = vdwg.mxu0
  %2003 = vmatpush.msra.mxu0 0.0
  %2004 = vmatpush.msra.mxu0 0.0
  %2005 = vmatpush.msra.mxu0 0.0
  %2006 = vmatpush.msra.mxu0 0.0
  %2007 = vmatpush.msra.mxu0 0.0
  %2008 = vmatpush.msra.mxu0 0.0
  %2009 = vmatpush.msra.mxu0 0.0
  %2010 = vmatpush.msra.mxu0 0.0
  %2011 = vmatpush.msra.mxu0 0.0
  %2012 = vmatpush.msra.mxu0 0.0
  %2013 = vmatpush.msra.mxu0 0.0
  %2014 = vmatpush.msra.mxu0 0.0
  %2015 = vmatpush.msra.mxu0 0.0
  %2016 = vmatpush.msra.mxu0 0.0
  %2017 = vmatpush.msra.mxu0 0.0
  %v2018 = vand.u32 %v1877, 4294901760
  %2019 = vmatpush.msra.mxu0 %v2018
  %v2020 = vand.u32 %v515, 4294901760
  %2021 = vmatmul.f32.gmra.mxu0 %v2020
  %v2022 = vpop.f32.mrf.mxu0
  %v2023 = vadd.f32 %v2001, %v2022
  %2024 = vdwg.mxu0
  %2025 = vmatpush.msra.mxu0 0.0
  %2026 = vmatpush.msra.mxu0 0.0
  %2027 = vmatpush.msra.mxu0 0.0
  %2028 = vmatpush.msra.mxu0 0.0
  %2029 = vmatpush.msra.mxu0 0.0
  %2030 = vmatpush.msra.mxu0 0.0
  %2031 = vmatpush.msra.mxu0 0.0
  %2032 = vmatpush.msra.mxu0 0.0
  %2033 = vmatpush.msra.mxu0 0.0
  %2034 = vmatpush.msra.mxu0 0.0
  %2035 = vmatpush.msra.mxu0 0.0
  %2036 = vmatpush.msra.mxu0 0.0
  %2037 = vmatpush.msra.mxu0 0.0
  %2038 = vmatpush.msra.mxu0 0.0
  %2039 = vmatpush.msra.mxu0 0.0
  %v2040 = vand.u32 %v1878, 4294901760
  %2041 = vmatpush.msra.mxu0 %v2040
  %v2042 = vand.u32 %v515, 4294901760
  %v2043 = vsub.f32 %v515, %v2042
  %v2044 = vand.u32 %v2043, 4294901760
  %v2045 = vsub.f32 %v2043, %v2044
  %v2046 = vand.u32 %v2045, 4294901760
  %2047 = vmatmul.f32.gmra.mxu0 %v2046
  %v2048 = vpop.f32.mrf.mxu0
  %v2049 = vadd.f32 0.0, %v2048
  %2050 = vdwg.mxu0
  %2051 = vmatpush.msra.mxu0 0.0
  %2052 = vmatpush.msra.mxu0 0.0
  %2053 = vmatpush.msra.mxu0 0.0
  %2054 = vmatpush.msra.mxu0 0.0
  %2055 = vmatpush.msra.mxu0 0.0
  %2056 = vmatpush.msra.mxu0 0.0
  %2057 = vmatpush.msra.mxu0 0.0
  %2058 = vmatpush.msra.mxu0 0.0
  %2059 = vmatpush.msra.mxu0 0.0
  %2060 = vmatpush.msra.mxu0 0.0
  %2061 = vmatpush.msra.mxu0 0.0
  %2062 = vmatpush.msra.mxu0 0.0
  %2063 = vmatpush.msra.mxu0 0.0
  %2064 = vmatpush.msra.mxu0 0.0
  %2065 = vmatpush.msra.mxu0 0.0
  %v2066 = vand.u32 %v1878, 4294901760
  %v2067 = vsub.f32 %v1878, %v2066
  %v2068 = vand.u32 %v2067, 4294901760
  %v2069 = vsub.f32 %v2067, %v2068
  %v2070 = vand.u32 %v2069, 4294901760
  %2071 = vmatpush.msra.mxu0 %v2070
  %v2072 = vand.u32 %v515, 4294901760
  %2073 = vmatmul.f32.gmra.mxu0 %v2072
  %v2074 = vpop.f32.mrf.mxu0
  %v2075 = vadd.f32 %v2049, %v2074
  %2076 = vdwg.mxu0
  %2077 = vmatpush.msra.mxu0 0.0
  %2078 = vmatpush.msra.mxu0 0.0
  %2079 = vmatpush.msra.mxu0 0.0
  %2080 = vmatpush.msra.mxu0 0.0
  %2081 = vmatpush.msra.mxu0 0.0
  %2082 = vmatpush.msra.mxu0 0.0
  %2083 = vmatpush.msra.mxu0 0.0
  %2084 = vmatpush.msra.mxu0 0.0
  %2085 = vmatpush.msra.mxu0 0.0
  %2086 = vmatpush.msra.mxu0 0.0
  %2087 = vmatpush.msra.mxu0 0.0
  %2088 = vmatpush.msra.mxu0 0.0
  %2089 = vmatpush.msra.mxu0 0.0
  %2090 = vmatpush.msra.mxu0 0.0
  %2091 = vmatpush.msra.mxu0 0.0
  %v2092 = vand.u32 %v1878, 4294901760
  %v2093 = vsub.f32 %v1878, %v2092
  %2094 = vmatpush.msra.mxu0 %v2093
  %v2095 = vand.u32 %v515, 4294901760
  %v2096 = vsub.f32 %v515, %v2095
  %2097 = vmatmul.f32.gmra.mxu0 %v2096
  %v2098 = vpop.f32.mrf.mxu0
  %v2099 = vadd.f32 %v2075, %v2098
  %2100 = vdwg.mxu0
  %2101 = vmatpush.msra.mxu0 0.0
  %2102 = vmatpush.msra.mxu0 0.0
  %2103 = vmatpush.msra.mxu0 0.0
  %2104 = vmatpush.msra.mxu0 0.0
  %2105 = vmatpush.msra.mxu0 0.0
  %2106 = vmatpush.msra.mxu0 0.0
  %2107 = vmatpush.msra.mxu0 0.0
  %2108 = vmatpush.msra.mxu0 0.0
  %2109 = vmatpush.msra.mxu0 0.0
  %2110 = vmatpush.msra.mxu0 0.0
  %2111 = vmatpush.msra.mxu0 0.0
  %2112 = vmatpush.msra.mxu0 0.0
  %2113 = vmatpush.msra.mxu0 0.0
  %2114 = vmatpush.msra.mxu0 0.0
  %2115 = vmatpush.msra.mxu0 0.0
  %v2116 = vand.u32 %v1878, 4294901760
  %2117 = vmatpush.msra.mxu0 %v2116
  %v2118 = vand.u32 %v515, 4294901760
  %v2119 = vsub.f32 %v515, %v2118
  %v2120 = vand.u32 %v2119, 4294901760
  %2121 = vmatmul.f32.gmra.mxu0 %v2120
  %v2122 = vpop.f32.mrf.mxu0
  %v2123 = vadd.f32 %v2099, %v2122
  %2124 = vdwg.mxu0
  %2125 = vmatpush.msra.mxu0 0.0
  %2126 = vmatpush.msra.mxu0 0.0
  %2127 = vmatpush.msra.mxu0 0.0
  %2128 = vmatpush.msra.mxu0 0.0
  %2129 = vmatpush.msra.mxu0 0.0
  %2130 = vmatpush.msra.mxu0 0.0
  %2131 = vmatpush.msra.mxu0 0.0
  %2132 = vmatpush.msra.mxu0 0.0
  %2133 = vmatpush.msra.mxu0 0.0
  %2134 = vmatpush.msra.mxu0 0.0
  %2135 = vmatpush.msra.mxu0 0.0
  %2136 = vmatpush.msra.mxu0 0.0
  %2137 = vmatpush.msra.mxu0 0.0
  %2138 = vmatpush.msra.mxu0 0.0
  %2139 = vmatpush.msra.mxu0 0.0
  %v2140 = vand.u32 %v1878, 4294901760
  %v2141 = vsub.f32 %v1878, %v2140
  %v2142 = vand.u32 %v2141, 4294901760
  %2143 = vmatpush.msra.mxu0 %v2142
  %v2144 = vand.u32 %v515, 4294901760
  %2145 = vmatmul.f32.gmra.mxu0 %v2144
  %v2146 = vpop.f32.mrf.mxu0
  %v2147 = vadd.f32 %v2123, %v2146
  %2148 = vdwg.mxu0
  %2149 = vmatpush.msra.mxu0 0.0
  %2150 = vmatpush.msra.mxu0 0.0
  %2151 = vmatpush.msra.mxu0 0.0
  %2152 = vmatpush.msra.mxu0 0.0
  %2153 = vmatpush.msra.mxu0 0.0
  %2154 = vmatpush.msra.mxu0 0.0
  %2155 = vmatpush.msra.mxu0 0.0
  %2156 = vmatpush.msra.mxu0 0.0
  %2157 = vmatpush.msra.mxu0 0.0
  %2158 = vmatpush.msra.mxu0 0.0
  %2159 = vmatpush.msra.mxu0 0.0
  %2160 = vmatpush.msra.mxu0 0.0
  %2161 = vmatpush.msra.mxu0 0.0
  %2162 = vmatpush.msra.mxu0 0.0
  %2163 = vmatpush.msra.mxu0 0.0
  %v2164 = vand.u32 %v1878, 4294901760
  %2165 = vmatpush.msra.mxu0 %v2164
  %v2166 = vand.u32 %v515, 4294901760
  %2167 = vmatmul.f32.gmra.mxu0 %v2166
  %v2168 = vpop.f32.mrf.mxu0
  %v2169 = vadd.f32 %v2147, %v2168
  %2170 = vdwg.mxu0
  %v2171 = vadd.f32 %v1729, %v1875
  %2172 = vadd.xlane.f32.xlu0 %v2171
  %v2173 = vpop.xlane.xlu0 %2172
  %v2174 = vmul.f32 %v2173, 0.001953125
  %v2175 = vadd.f32 %v2023, %v2169
  %2176 = vadd.xlane.f32.xlu0 %v2175
  %v2177 = vpop.xlane.xlu0 %2176
  %v2178 = vmul.f32 %v2177, 0.001953125
  %v2179 = vmul.f32 %v2174, %v2174
  %v2180 = vsub.f32 %v2178, %v2179
  %v2181 = vmax.f32 %v2180, 0.0
  %v2182 = vsub.f32 %v1385, %v2174
  %v2183 = vsub.f32 %v1583, %v2174
  %v2184 = vadd.f32 %v2181, 1e-05
  %v2185 = vrsqrt.pop %v2184
  %v2186 = vmul.f32 %v2185, %v2184
  %v2187 = vmul.f32 %v2186, %v2185
  %v2188 = vmul.f32 0.5, %v2187
  %v2189 = vsub.f32 1.5, %v2188
  %v2190 = vmul.f32 %v2185, %v2189
  %vm2191 = vweird.f32 %v2184
  %vm2192 = vweird.f32 %v2185
  %vm2193 = vmor %vm2191, %vm2192
  %v2194 = vsel %vm2193, %v2185, %v2190
  %v2195 = vmul.f32 %v2182, %v2194
  %v2196 = vmul.f32 %v2183, %v2194
  %v2197 = vld [vmem:[%s9] sm:$0xff]
  %2199 = vset.pattern.permute.xlu0 0
  %2200 = vperm.xlu0 %2199, %v2197
  %v2201 = vpop.permute.xlu0 %2200
  %v2203 = vmul.f32 %v2195, %v2201
  %v2204 = vmul.f32 %v2196, %v2201
  %v2205 = vld [vmem:[%s10] sm:$0xff]
  %2207 = vset.pattern.permute.xlu0 0
  %2208 = vperm.xlu0 %2207, %v2205
  %v2209 = vpop.permute.xlu0 %2208
  %v2211 = vadd.f32 %v2203, %v2209
  %v2212 = vadd.f32 %v2204, %v2209
  %v2213 = vadd.f32 %v38, %v2211
  %v2214 = vadd.f32 %v39, %v2212
  %v2215 = vmax.f32 %v2213, 0.0
  %v2216 = vmax.f32 %v2214, 0.0
  %2217 = vst [vmem:[%s11] sm:$0xff] %v2215
  %2218 = vst [vmem:[%s11 + $0x8] sm:$0xff] %v2216
  // Predicated region
  $region46: #{residual_layer_forward.1} parent=0 // pred_check
    _
  $region47: #{residual_layer_forward.1} parent=0 // pred_check_branch
    %2220 = sbr.rel (0) target = $region49
  $region48: #{residual_layer_forward.1} parent=0 // pred_region
    _
  $region49: #{residual_layer_forward.1} parent=0 // pred_fallthru
    _
  // Predicated region
  $region50: #{residual_layer_forward.1} parent=0 // pred_check
    _
  $region51: #{residual_layer_forward.1} parent=0 // pred_check_branch
    %2222 = sbr.rel (0) target = $region53
  $region52: #{residual_layer_forward.1} parent=0 // pred_region
    _
  $region53: #{residual_layer_forward.1} parent=0 // pred_fallthru
    _

</llo_original>
